<compile_context>
chip_gen: v7x
topology: tpu7x:2x2x1
jax: 0.10.0
libtpu: 0.0.40
codegen_flags: <defaults>
</compile_context>

<pallas_src>
import functools
import math

import jax
import jax.numpy as jnp
from jax.experimental import pallas as pl
from jax.experimental.pallas import tpu as pltpu

EPS = 1.1920928955078125e-07      # torch.finfo(torch.float32).eps
_NQ = 11                          # moments: t, t^2, then (p, p*t, p^2) x3
_LANE = 128


# --------------------------------------------------------------------------- #
# Kernel: streaming raw-moment accumulation into per-split partial outputs.   #
# --------------------------------------------------------------------------- #
def _moment_kernel(short_ref, med_ref, long_ref, tgt_ref, out_ref, *,
                   n_chunks, tile, steps_per_split, tf, row_groups):
    split = pl.program_id(0)          # "parallel" axis: time split across TCs
    step = pl.program_id(1)           # "arbitrary" axis: accumulation steps
    # Logical lane offset of this grid step within the folded time axis.
    start = (split * steps_per_split + step) * tile

    @pl.when(step == 0)
    def _init():
        out_ref[...] = jnp.zeros_like(out_ref)

    unroll = max(1, min(8, n_chunks))

    def accumulate(masked):
        # Row groups of <=16 rows keep the 11 running (rg,128) f32 partials
        # bounded to <=22 vregs (no spills for large folded batches).
        for r0, rg in row_groups:
            lane = jax.lax.broadcasted_iota(jnp.int32, (rg, _LANE), 1)

            def body(c, accs):
                off = pl.multiple_of(c * _LANE, _LANE)
                sl = pl.ds(off, _LANE)
                t = tgt_ref[r0:r0 + rg, sl].astype(jnp.float32)
                p0 = short_ref[r0:r0 + rg, sl].astype(jnp.float32)
                p1 = med_ref[r0:r0 + rg, sl].astype(jnp.float32)
                p2 = long_ref[r0:r0 + rg, sl].astype(jnp.float32)
                if masked:
                    # Mask the raw loads (before ANY product) so ragged /
                    # out-of-bounds lanes contribute exactly zero.
                    valid = (lane + (start + c * _LANE)) < tf
                    t = jnp.where(valid, t, 0.0)
                    p0 = jnp.where(valid, p0, 0.0)
                    p1 = jnp.where(valid, p1, 0.0)
                    p2 = jnp.where(valid, p2, 0.0)
                # TODO(synk): on v7x (VALU-limited after the 2-TC split) the 11
                # running adds could be offloaded to the idle MXU by
                # contracting per-chunk products with a ones vector.
                terms = (t, t * t,
                         p0, p0 * t, p0 * p0,
                         p1, p1 * t, p1 * p1,
                         p2, p2 * t, p2 * p2)
                return tuple(a + v for a, v in zip(accs, terms))

            init = tuple(jnp.zeros((rg, _LANE), jnp.float32)
                         for _ in range(_NQ))
            accs = jax.lax.fori_loop(0, n_chunks, body, init, unroll=unroll)
            for q in range(_NQ):
                out_ref[0, r0:r0 + rg, q * _LANE:(q + 1) * _LANE] += accs[q]

    all_valid = start + tile <= tf

    @pl.when(all_valid)
    def _full_tile():
        accumulate(False)

    @pl.when(jnp.logical_and(jnp.logical_not(all_valid), start < tf))
    def _ragged_tile():
        accumulate(True)


# --------------------------------------------------------------------------- #
# Wrapper.                                                                     #
# --------------------------------------------------------------------------- #
def _as_bt(x):
    """(B, 1, T) / (B, T) / (T,) -> (B, T); never squeezes the batch axis."""
    x = jnp.asarray(x)
    if x.ndim == 3:
        x = jnp.squeeze(x, axis=1)
    elif x.ndim == 1:
        x = x[None, :]
    assert x.ndim == 2, x.shape
    return x


def _vmem_budget():
    """(vmem_limit_bytes, input-double-buffer budget) for this generation."""
    try:
        info = pltpu.get_tpu_info()
        phys = int(getattr(info, "vmem_capacity_bytes", 0)) or 64 * 1024 * 1024
    except Exception:
        phys = 64 * 1024 * 1024          # conservative fallback (v7x per-TC)
    limit = min(96 * 1024 * 1024, (phys * 3) // 4)   # 96 MiB v5e/v6e, 48 MiB v7x
    buf = max(4 * 1024 * 1024, limit - 8 * 1024 * 1024)
    return limit, buf


def sisdr_loss_pallas(short_decode, medium_decode, long_decode, target_audios,
                      alpha, beta):
    """SISDRLoss.forward (SpEx multi-scale SI-SDR, zero_mean=True)."""
    s = _as_bt(short_decode)
    m = _as_bt(medium_decode)
    l = _as_bt(long_decode)
    t = _as_bt(target_audios)
    assert s.shape == m.shape == l.shape == t.shape, "signal shapes must match"
    B, T = t.shape

    itemsizes = [x.dtype.itemsize for x in (s, m, l, t)]
    sum_item = int(sum(itemsizes))
    min_item = int(min(itemsizes))

    # Dtype-aware sublane fold: fill every packed sublane of a vreg.
    pack = max(8, 32 // min_item)                 # 8 f32 / 16 bf16 / 32 int8
    want_fold = pack // math.gcd(B, pack)
    # Fold must divide T exactly so the (B,T)->(B*fold,T/fold) reshape is a
    # metadata-only view (no HBM pad/copy).  Odd T simply degrades the fold.
    # TODO(synk): for odd T and tiny B, sublane utilization drops; an in-kernel
    # lane->sublane reshuffle could recover it if that case matters.
    fold = min(want_fold, T & (-T))
    bk = B * fold
    tf = T // fold                                # folded per-row length

    vmem_limit, buf_budget = _vmem_budget()

    t_units = -(-tf // _LANE)                     # 128-lane chunks (ceil)
    n_splits = 2 if t_units >= 2 else 1           # time split across TCs (v7x)

    # Tile: as many 128-lane chunks per grid step as the double-buffer budget
    # allows (4 inputs x 2 pipeline buffers), capped by what one split needs.
    max_chunks = max(1, buf_budget // (2 * bk * _LANE * sum_item))
    need_per_split = -(-t_units // n_splits)
    n_chunks = max(1, min(max_chunks, need_per_split))
    tile = n_chunks * _LANE
    steps_per_split = -(-need_per_split // n_chunks)

    # Clamp index-map block index to the last in-range block; any over-covered
    # lanes are zeroed by the in-kernel mask.
    max_blk = max(0, -(-tf // tile) - 1)

    if bk % 16 == 0:
        rowg = 16
    elif bk % 8 == 0:
        rowg = 8
    else:
        rowg = bk
    row_groups = tuple((r0, rowg) for r0 in range(0, bk, rowg))

    sv, mv, lv, tv = (x.reshape(bk, tf) for x in (s, m, l, t))

    sig_spec = pl.BlockSpec(
        (bk, tile),
        lambda sp, i: (0, jnp.minimum(sp * steps_per_split + i, max_blk)))

    kernel = functools.partial(
        _moment_kernel, n_chunks=n_chunks, tile=tile,
        steps_per_split=steps_per_split, tf=tf, row_groups=row_groups)

    cost = pl.CostEstimate(
        flops=18 * bk * tf,                       # 7 muls + 11 adds / sample
        transcendentals=0,
        bytes_accessed=bk * tf * sum_item + n_splits * bk * _NQ * _LANE * 4)

    moments = pl.pallas_call(
        kernel,
        out_shape=jax.ShapeDtypeStruct((n_splits, bk, _NQ * _LANE), jnp.float32),
        grid_spec=pltpu.PrefetchScalarGridSpec(
            num_scalar_prefetch=0,
            grid=(n_splits, steps_per_split),
            in_specs=[sig_spec, sig_spec, sig_spec, sig_spec],
            out_specs=pl.BlockSpec((1, bk, _NQ * _LANE),
                                   lambda sp, i: (sp, 0, 0)),
        ),
        compiler_params=pltpu.CompilerParams(
            dimension_semantics=("parallel", "arbitrary"),
            vmem_limit_bytes=vmem_limit),
        cost_estimate=cost,
    )(sv, mv, lv, tv)

    # ---- tiny epilogue in plain JAX: sum splits/fold/lanes, SI-SDR math ----
    mom = moments.reshape(n_splits, B, fold, _NQ, _LANE).sum(axis=(0, 2, 4))
    Tf = jnp.float32(T)
    st, stt = mom[:, 0], mom[:, 1]
    mt = st / Tf
    ctt = stt - Tf * mt * mt                      # ||t - mean(t)||^2

    def sisdr(base):
        sp, spt, spp = mom[:, base], mom[:, base + 1], mom[:, base + 2]
        mp = sp / Tf
        cpt = spt - Tf * mp * mt                  # <p_c, t_c>
        cpp = spp - Tf * mp * mp                  # ||p_c||^2
        a = (cpt + EPS) / (ctt + EPS)             # projection scale
        tgt_e = a * a * ctt                       # ||a*t_c||^2
        noise_e = tgt_e - 2.0 * a * cpt + cpp     # ||a*t_c - p_c||^2
        return 10.0 * jnp.log10((tgt_e + EPS) / (noise_e + EPS))

    # TODO(synk): the one-pass moment expansion can lose precision vs the
    # centered reference for very long recordings / large DC offsets; switch
    # to a compensated epilogue if that regime matters.
    loss = -(jnp.float32(1.0 - alpha - beta) * jnp.mean(sisdr(2))
             + jnp.float32(alpha) * jnp.mean(sisdr(5))
             + jnp.float32(beta) * jnp.mean(sisdr(8)))
    return loss


def spex_loss_pallas(short_decode, medium_decode, long_decode, target_audios,
                     class_lin=None, target_ids=None, is_train=False,
                     alpha=0.1, beta=0.1, gamma=0.5, **_):
    """SpexLoss.forward: SI-SDR (Pallas kernel) + gamma * CE (tiny, plain JAX)."""
    sdr = sisdr_loss_pallas(short_decode, medium_decode, long_decode,
                            target_audios, alpha, beta)
    if is_train:
        logits = jnp.asarray(class_lin, jnp.float32)          # (B, C)
        logp = jax.nn.log_softmax(logits, axis=-1)
        ce = -jnp.mean(jnp.take_along_axis(
            logp, jnp.asarray(target_ids)[:, None], axis=-1))
        return sdr + gamma * ce
    return sdr


# -------- pure-JAX reference (torchmetrics SI-SDR, zero_mean=True) -----------
def _sisdr_ref(preds, target):
    preds = preds - jnp.mean(preds, axis=-1, keepdims=True)
    target = target - jnp.mean(target, axis=-1, keepdims=True)
    a = (jnp.sum(preds * target, -1, keepdims=True) + EPS) / (
        jnp.sum(target ** 2, -1, keepdims=True) + EPS)
    ts = a * target
    noise = ts - preds
    val = (jnp.sum(ts ** 2, -1) + EPS) / (jnp.sum(noise ** 2, -1) + EPS)
    return jnp.mean(10.0 * jnp.log10(val))


def _loss_ref(s, m, l, t, alpha, beta):
    s, m, l, t = (x.astype(jnp.float32) for x in map(_as_bt, (s, m, l, t)))
    return (-(1.0 - alpha - beta) * _sisdr_ref(s, t)
            - alpha * _sisdr_ref(m, t)
            - beta * _sisdr_ref(l, t))


if __name__ == "__main__":
    alpha, beta, gamma = 0.1, 0.1, 0.5
    key = jax.random.PRNGKey(0)

    def make_case(k, B, T, dtype=jnp.float32):
        k1, k2, k3, k4 = jax.random.split(k, 4)
        target = jax.random.normal(k4, (B, 1, T), dtype=jnp.float32)
        short = target + 0.30 * jax.random.normal(k1, (B, 1, T), jnp.float32)
        med = target + 0.20 * jax.random.normal(k2, (B, 1, T), jnp.float32)
        long_ = target + 0.10 * jax.random.normal(k3, (B, 1, T), jnp.float32)
        return tuple(x.astype(dtype) for x in (short, med, long_, target))

    k_a, k_b, k_c, k_ce = jax.random.split(key, 4)

    # Case 1: B=4, T=1024 f32 (fold 2, two splits, full tiles only).
    s, m, l, t = make_case(k_a, B=4, T=1024)
    loss = jax.block_until_ready(sisdr_loss_pallas(s, m, l, t, alpha, beta))
    ref = _loss_ref(s, m, l, t, alpha, beta)
    assert jnp.isfinite(loss)
    assert jnp.allclose(loss, ref, rtol=1e-3, atol=1e-3), (loss, ref)

    # Case 2: B=2, ragged T=800 f32 (fold 4, in-kernel tail masking, no pad).
    s2, m2, l2, t2 = make_case(k_b, B=2, T=800)
    loss2 = jax.block_until_ready(sisdr_loss_pallas(s2, m2, l2, t2, alpha, beta))
    ref2 = _loss_ref(s2, m2, l2, t2, alpha, beta)
    assert jnp.isfinite(loss2)
    assert jnp.allclose(loss2, ref2, rtol=1e-3, atol=1e-3), (loss2, ref2)

    # Case 3: B=2, T=1024 bf16 inputs (dtype-aware fold of 8 -> 16 rows).
    s3, m3, l3, t3 = make_case(k_c, B=2, T=1024, dtype=jnp.bfloat16)
    loss3 = jax.block_until_ready(sisdr_loss_pallas(s3, m3, l3, t3, alpha, beta))
    ref3 = _loss_ref(s3, m3, l3, t3, alpha, beta)
    assert jnp.isfinite(loss3)
    assert jnp.allclose(loss3, ref3, rtol=5e-3, atol=5e-3), (loss3, ref3)

    # SpexLoss train branch (adds gamma * cross-entropy on speaker logits).
    n_classes = 16
    kc1, kc2 = jax.random.split(k_ce)
    class_lin = jax.random.normal(kc1, (4, n_classes), dtype=jnp.float32)
    target_ids = jax.random.randint(kc2, (4,), 0, n_classes)
    spex = jax.block_until_ready(
        spex_loss_pallas(s, m, l, t, class_lin=class_lin, target_ids=target_ids,
                         is_train=True, alpha=alpha, beta=beta, gamma=gamma))
    assert jnp.isfinite(spex)

    print("KERNEL_OK")
</pallas_src>

<mosaic_0001>
module attributes {stable_mosaic.version = 11 : i64} {
  func.func @_moment_kernel(%arg0: i32, %arg1: i32, %arg2: memref<8x256xf32, #tpu.memory_space<vmem>>, %arg3: memref<8x256xf32, #tpu.memory_space<vmem>>, %arg4: memref<8x256xf32, #tpu.memory_space<vmem>>, %arg5: memref<8x256xf32, #tpu.memory_space<vmem>>, %arg6: memref<1x8x1408xf32, #tpu.memory_space<vmem>>) attributes {dimension_semantics = [#tpu.dimension_semantics<parallel>, #tpu.dimension_semantics<arbitrary>], iteration_bounds = array<i64: 2, 1>, scalar_prefetch = 0 : i64, scratch_operands = 0 : i64, tpu.core_type = #tpu.core_type<tc>, window_params = [{transform_indices = @transform_0, window_bounds = array<i64: 8, 256>}, {transform_indices = @transform_1, window_bounds = array<i64: 8, 256>}, {transform_indices = @transform_2, window_bounds = array<i64: 8, 256>}, {transform_indices = @transform_3, window_bounds = array<i64: 8, 256>}, {transform_indices = @transform_4, window_bounds = array<i64: 1, 8, 1408>}]} {
    %c1_i32 = arith.constant 1 : i32
    %0 = arith.muli %arg0, %c1_i32 : i32
    %1 = arith.addi %0, %arg1 : i32
    %c256_i32 = arith.constant 256 : i32
    %2 = arith.muli %1, %c256_i32 : i32
    %c0_i32 = arith.constant 0 : i32
    %3 = arith.cmpi eq, %arg1, %c0_i32 : i32
    %4 = arith.extui %3 : i1 to i32
    %c0_i32_0 = arith.constant 0 : i32
    %5 = arith.cmpi ne, %4, %c0_i32_0 : i32
    scf.if %5 {
      %cst = arith.constant 0.000000e+00 : f32
      %15 = vector.broadcast %cst : f32 to vector<1x8x1408xf32>
      %c0 = arith.constant 0 : index
      %c0_5 = arith.constant 0 : index
      %c0_6 = arith.constant 0 : index
      %16 = vector.load %arg6[%c0, %c0_5, %c0_6] : memref<1x8x1408xf32, #tpu.memory_space<vmem>>, vector<1x8x1408xf32>
      tpu.vector_store %arg6[%c0, %c0_5, %c0_6], %15 {strides = array<i32>} : memref<1x8x1408xf32, #tpu.memory_space<vmem>>, vector<1x8x1408xf32>,
    } else {
    }
    %c256_i32_1 = arith.constant 256 : i32
    %6 = arith.addi %2, %c256_i32_1 : i32
    %c512_i32 = arith.constant 512 : i32
    %7 = arith.cmpi sle, %6, %c512_i32 : i32
    %8 = arith.extui %7 : i1 to i32
    %c0_i32_2 = arith.constant 0 : i32
    %9 = arith.cmpi ne, %8, %c0_i32_2 : i32
    scf.if %9 {
      %cst = arith.constant 0.000000e+00 : f32
      %15 = vector.broadcast %cst : f32 to vector<8x128xf32>
      %cst_5 = arith.constant 0.000000e+00 : f32
      %16 = vector.broadcast %cst_5 : f32 to vector<8x128xf32>
      %cst_6 = arith.constant 0.000000e+00 : f32
      %17 = vector.broadcast %cst_6 : f32 to vector<8x128xf32>
      %cst_7 = arith.constant 0.000000e+00 : f32
      %18 = vector.broadcast %cst_7 : f32 to vector<8x128xf32>
      %cst_8 = arith.constant 0.000000e+00 : f32
      %19 = vector.broadcast %cst_8 : f32 to vector<8x128xf32>
      %cst_9 = arith.constant 0.000000e+00 : f32
      %20 = vector.broadcast %cst_9 : f32 to vector<8x128xf32>
      %cst_10 = arith.constant 0.000000e+00 : f32
      %21 = vector.broadcast %cst_10 : f32 to vector<8x128xf32>
      %cst_11 = arith.constant 0.000000e+00 : f32
      %22 = vector.broadcast %cst_11 : f32 to vector<8x128xf32>
      %cst_12 = arith.constant 0.000000e+00 : f32
      %23 = vector.broadcast %cst_12 : f32 to vector<8x128xf32>
      %cst_13 = arith.constant 0.000000e+00 : f32
      %24 = vector.broadcast %cst_13 : f32 to vector<8x128xf32>
      %cst_14 = arith.constant 0.000000e+00 : f32
      %25 = vector.broadcast %cst_14 : f32 to vector<8x128xf32>
      %c0_i32_15 = arith.constant 0 : i32
      %c128_i32 = arith.constant 128 : i32
      %26 = arith.muli %c0_i32_15, %c128_i32 : i32
      %27 = tpu.assume_multiple %26, 128 : i32
      %c0 = arith.constant 0 : index
      %28 = arith.index_cast %27 : i32 to index
      %29 = vector.load %arg5[%c0, %28] : memref<8x256xf32, #tpu.memory_space<vmem>>, vector<8x128xf32>
      %c0_16 = arith.constant 0 : index
      %30 = arith.index_cast %27 : i32 to index
      %31 = vector.load %arg2[%c0_16, %30] : memref<8x256xf32, #tpu.memory_space<vmem>>, vector<8x128xf32>
      %c0_17 = arith.constant 0 : index
      %32 = arith.index_cast %27 : i32 to index
      %33 = vector.load %arg3[%c0_17, %32] : memref<8x256xf32, #tpu.memory_space<vmem>>, vector<8x128xf32>
      %c0_18 = arith.constant 0 : index
      %34 = arith.index_cast %27 : i32 to index
      %35 = vector.load %arg4[%c0_18, %34] : memref<8x256xf32, #tpu.memory_space<vmem>>, vector<8x128xf32>
      %36 = arith.mulf %29, %29 : vector<8x128xf32>
      %37 = arith.mulf %31, %29 : vector<8x128xf32>
      %38 = arith.mulf %31, %31 : vector<8x128xf32>
      %39 = arith.mulf %33, %29 : vector<8x128xf32>
      %40 = arith.mulf %33, %33 : vector<8x128xf32>
      %41 = arith.mulf %35, %29 : vector<8x128xf32>
      %42 = arith.mulf %35, %35 : vector<8x128xf32>
      %43 = arith.addf %15, %29 : vector<8x128xf32>
      %44 = arith.addf %16, %36 : vector<8x128xf32>
      %45 = arith.addf %17, %31 : vector<8x128xf32>
      %46 = arith.addf %18, %37 : vector<8x128xf32>
      %47 = arith.addf %19, %38 : vector<8x128xf32>
      %48 = arith.addf %20, %33 : vector<8x128xf32>
      %49 = arith.addf %21, %39 : vector<8x128xf32>
      %50 = arith.addf %22, %40 : vector<8x128xf32>
      %51 = arith.addf %23, %35 : vector<8x128xf32>
      %52 = arith.addf %24, %41 : vector<8x128xf32>
      %53 = arith.addf %25, %42 : vector<8x128xf32>
      %c1_i32_19 = arith.constant 1 : i32
      %c128_i32_20 = arith.constant 128 : i32
      %54 = arith.muli %c1_i32_19, %c128_i32_20 : i32
      %55 = tpu.assume_multiple %54, 128 : i32
      %c0_21 = arith.constant 0 : index
      %56 = arith.index_cast %55 : i32 to index
      %57 = vector.load %arg5[%c0_21, %56] : memref<8x256xf32, #tpu.memory_space<vmem>>, vector<8x128xf32>
      %c0_22 = arith.constant 0 : index
      %58 = arith.index_cast %55 : i32 to index
      %59 = vector.load %arg2[%c0_22, %58] : memref<8x256xf32, #tpu.memory_space<vmem>>, vector<8x128xf32>
      %c0_23 = arith.constant 0 : index
      %60 = arith.index_cast %55 : i32 to index
      %61 = vector.load %arg3[%c0_23, %60] : memref<8x256xf32, #tpu.memory_space<vmem>>, vector<8x128xf32>
      %c0_24 = arith.constant 0 : index
      %62 = arith.index_cast %55 : i32 to index
      %63 = vector.load %arg4[%c0_24, %62] : memref<8x256xf32, #tpu.memory_space<vmem>>, vector<8x128xf32>
      %64 = arith.mulf %57, %57 : vector<8x128xf32>
      %65 = arith.mulf %59, %57 : vector<8x128xf32>
      %66 = arith.mulf %59, %59 : vector<8x128xf32>
      %67 = arith.mulf %61, %57 : vector<8x128xf32>
      %68 = arith.mulf %61, %61 : vector<8x128xf32>
      %69 = arith.mulf %63, %57 : vector<8x128xf32>
      %70 = arith.mulf %63, %63 : vector<8x128xf32>
      %71 = arith.addf %43, %57 : vector<8x128xf32>
      %72 = arith.addf %44, %64 : vector<8x128xf32>
      %73 = arith.addf %45, %59 : vector<8x128xf32>
      %74 = arith.addf %46, %65 : vector<8x128xf32>
      %75 = arith.addf %47, %66 : vector<8x128xf32>
      %76 = arith.addf %48, %61 : vector<8x128xf32>
      %77 = arith.addf %49, %67 : vector<8x128xf32>
      %78 = arith.addf %50, %68 : vector<8x128xf32>
      %79 = arith.addf %51, %63 : vector<8x128xf32>
      %80 = arith.addf %52, %69 : vector<8x128xf32>
      %81 = arith.addf %53, %70 : vector<8x128xf32>
      %c2_i32 = arith.constant 2 : i32
      %c0_25 = arith.constant 0 : index
      %c0_26 = arith.constant 0 : index
      %c0_27 = arith.constant 0 : index
      %82 = vector.load %arg6[%c0_25, %c0_26, %c0_27] : memref<1x8x1408xf32, #tpu.memory_space<vmem>>, vector<1x8x128xf32>
      %83 = vector.shape_cast %82 : vector<1x8x128xf32> to vector<8x128xf32>
      %84 = arith.addf %83, %71 : vector<8x128xf32>
      %c0_28 = arith.constant 0 : index
      %c0_29 = arith.constant 0 : index
      %c0_30 = arith.constant 0 : index
      %85 = vector.load %arg6[%c0_28, %c0_29, %c0_30] : memref<1x8x1408xf32, #tpu.memory_space<vmem>>, vector<1x8x128xf32>
      %86 = vector.shape_cast %85 : vector<1x8x128xf32> to vector<8x128xf32>
      %87 = vector.shape_cast %84 : vector<8x128xf32> to vector<1x8x128xf32>
      tpu.vector_store %arg6[%c0_28, %c0_29, %c0_30], %87 {strides = array<i32>} : memref<1x8x1408xf32, #tpu.memory_space<vmem>>, vector<1x8x128xf32>,
      %c0_31 = arith.constant 0 : index
      %c0_32 = arith.constant 0 : index
      %c128 = arith.constant 128 : index
      %88 = vector.load %arg6[%c0_31, %c0_32, %c128] : memref<1x8x1408xf32, #tpu.memory_space<vmem>>, vector<1x8x128xf32>
      %89 = vector.shape_cast %88 : vector<1x8x128xf32> to vector<8x128xf32>
      %90 = arith.addf %89, %72 : vector<8x128xf32>
      %c0_33 = arith.constant 0 : index
      %c0_34 = arith.constant 0 : index
      %c128_35 = arith.constant 128 : index
      %91 = vector.load %arg6[%c0_33, %c0_34, %c128_35] : memref<1x8x1408xf32, #tpu.memory_space<vmem>>, vector<1x8x128xf32>
      %92 = vector.shape_cast %91 : vector<1x8x128xf32> to vector<8x128xf32>
      %93 = vector.shape_cast %90 : vector<8x128xf32> to vector<1x8x128xf32>
      tpu.vector_store %arg6[%c0_33, %c0_34, %c128_35], %93 {strides = array<i32>} : memref<1x8x1408xf32, #tpu.memory_space<vmem>>, vector<1x8x128xf32>,
      %c0_36 = arith.constant 0 : index
      %c0_37 = arith.constant 0 : index
      %c256 = arith.constant 256 : index
      %94 = vector.load %arg6[%c0_36, %c0_37, %c256] : memref<1x8x1408xf32, #tpu.memory_space<vmem>>, vector<1x8x128xf32>
      %95 = vector.shape_cast %94 : vector<1x8x128xf32> to vector<8x128xf32>
      %96 = arith.addf %95, %73 : vector<8x128xf32>
      %c0_38 = arith.constant 0 : index
      %c0_39 = arith.constant 0 : index
      %c256_40 = arith.constant 256 : index
      %97 = vector.load %arg6[%c0_38, %c0_39, %c256_40] : memref<1x8x1408xf32, #tpu.memory_space<vmem>>, vector<1x8x128xf32>
      %98 = vector.shape_cast %97 : vector<1x8x128xf32> to vector<8x128xf32>
      %99 = vector.shape_cast %96 : vector<8x128xf32> to vector<1x8x128xf32>
      tpu.vector_store %arg6[%c0_38, %c0_39, %c256_40], %99 {strides = array<i32>} : memref<1x8x1408xf32, #tpu.memory_space<vmem>>, vector<1x8x128xf32>,
      %c0_41 = arith.constant 0 : index
      %c0_42 = arith.constant 0 : index
      %c384 = arith.constant 384 : index
      %100 = vector.load %arg6[%c0_41, %c0_42, %c384] : memref<1x8x1408xf32, #tpu.memory_space<vmem>>, vector<1x8x128xf32>
      %101 = vector.shape_cast %100 : vector<1x8x128xf32> to vector<8x128xf32>
      %102 = arith.addf %101, %74 : vector<8x128xf32>
      %c0_43 = arith.constant 0 : index
      %c0_44 = arith.constant 0 : index
      %c384_45 = arith.constant 384 : index
      %103 = vector.load %arg6[%c0_43, %c0_44, %c384_45] : memref<1x8x1408xf32, #tpu.memory_space<vmem>>, vector<1x8x128xf32>
      %104 = vector.shape_cast %103 : vector<1x8x128xf32> to vector<8x128xf32>
      %105 = vector.shape_cast %102 : vector<8x128xf32> to vector<1x8x128xf32>
      tpu.vector_store %arg6[%c0_43, %c0_44, %c384_45], %105 {strides = array<i32>} : memref<1x8x1408xf32, #tpu.memory_space<vmem>>, vector<1x8x128xf32>,
      %c0_46 = arith.constant 0 : index
      %c0_47 = arith.constant 0 : index
      %c512 = arith.constant 512 : index
      %106 = vector.load %arg6[%c0_46, %c0_47, %c512] : memref<1x8x1408xf32, #tpu.memory_space<vmem>>, vector<1x8x128xf32>
      %107 = vector.shape_cast %106 : vector<1x8x128xf32> to vector<8x128xf32>
      %108 = arith.addf %107, %75 : vector<8x128xf32>
      %c0_48 = arith.constant 0 : index
      %c0_49 = arith.constant 0 : index
      %c512_50 = arith.constant 512 : index
      %109 = vector.load %arg6[%c0_48, %c0_49, %c512_50] : memref<1x8x1408xf32, #tpu.memory_space<vmem>>, vector<1x8x128xf32>
      %110 = vector.shape_cast %109 : vector<1x8x128xf32> to vector<8x128xf32>
      %111 = vector.shape_cast %108 : vector<8x128xf32> to vector<1x8x128xf32>
      tpu.vector_store %arg6[%c0_48, %c0_49, %c512_50], %111 {strides = array<i32>} : memref<1x8x1408xf32, #tpu.memory_space<vmem>>, vector<1x8x128xf32>,
      %c0_51 = arith.constant 0 : index
      %c0_52 = arith.constant 0 : index
      %c640 = arith.constant 640 : index
      %112 = vector.load %arg6[%c0_51, %c0_52, %c640] : memref<1x8x1408xf32, #tpu.memory_space<vmem>>, vector<1x8x128xf32>
      %113 = vector.shape_cast %112 : vector<1x8x128xf32> to vector<8x128xf32>
      %114 = arith.addf %113, %76 : vector<8x128xf32>
      %c0_53 = arith.constant 0 : index
      %c0_54 = arith.constant 0 : index
      %c640_55 = arith.constant 640 : index
      %115 = vector.load %arg6[%c0_53, %c0_54, %c640_55] : memref<1x8x1408xf32, #tpu.memory_space<vmem>>, vector<1x8x128xf32>
      %116 = vector.shape_cast %115 : vector<1x8x128xf32> to vector<8x128xf32>
      %117 = vector.shape_cast %114 : vector<8x128xf32> to vector<1x8x128xf32>
      tpu.vector_store %arg6[%c0_53, %c0_54, %c640_55], %117 {strides = array<i32>} : memref<1x8x1408xf32, #tpu.memory_space<vmem>>, vector<1x8x128xf32>,
      %c0_56 = arith.constant 0 : index
      %c0_57 = arith.constant 0 : index
      %c768 = arith.constant 768 : index
      %118 = vector.load %arg6[%c0_56, %c0_57, %c768] : memref<1x8x1408xf32, #tpu.memory_space<vmem>>, vector<1x8x128xf32>
      %119 = vector.shape_cast %118 : vector<1x8x128xf32> to vector<8x128xf32>
      %120 = arith.addf %119, %77 : vector<8x128xf32>
      %c0_58 = arith.constant 0 : index
      %c0_59 = arith.constant 0 : index
      %c768_60 = arith.constant 768 : index
      %121 = vector.load %arg6[%c0_58, %c0_59, %c768_60] : memref<1x8x1408xf32, #tpu.memory_space<vmem>>, vector<1x8x128xf32>
      %122 = vector.shape_cast %121 : vector<1x8x128xf32> to vector<8x128xf32>
      %123 = vector.shape_cast %120 : vector<8x128xf32> to vector<1x8x128xf32>
      tpu.vector_store %arg6[%c0_58, %c0_59, %c768_60], %123 {strides = array<i32>} : memref<1x8x1408xf32, #tpu.memory_space<vmem>>, vector<1x8x128xf32>,
      %c0_61 = arith.constant 0 : index
      %c0_62 = arith.constant 0 : index
      %c896 = arith.constant 896 : index
      %124 = vector.load %arg6[%c0_61, %c0_62, %c896] : memref<1x8x1408xf32, #tpu.memory_space<vmem>>, vector<1x8x128xf32>
      %125 = vector.shape_cast %124 : vector<1x8x128xf32> to vector<8x128xf32>
      %126 = arith.addf %125, %78 : vector<8x128xf32>
      %c0_63 = arith.constant 0 : index
      %c0_64 = arith.constant 0 : index
      %c896_65 = arith.constant 896 : index
      %127 = vector.load %arg6[%c0_63, %c0_64, %c896_65] : memref<1x8x1408xf32, #tpu.memory_space<vmem>>, vector<1x8x128xf32>
      %128 = vector.shape_cast %127 : vector<1x8x128xf32> to vector<8x128xf32>
      %129 = vector.shape_cast %126 : vector<8x128xf32> to vector<1x8x128xf32>
      tpu.vector_store %arg6[%c0_63, %c0_64, %c896_65], %129 {strides = array<i32>} : memref<1x8x1408xf32, #tpu.memory_space<vmem>>, vector<1x8x128xf32>,
      %c0_66 = arith.constant 0 : index
      %c0_67 = arith.constant 0 : index
      %c1024 = arith.constant 1024 : index
      %130 = vector.load %arg6[%c0_66, %c0_67, %c1024] : memref<1x8x1408xf32, #tpu.memory_space<vmem>>, vector<1x8x128xf32>
      %131 = vector.shape_cast %130 : vector<1x8x128xf32> to vector<8x128xf32>
      %132 = arith.addf %131, %79 : vector<8x128xf32>
      %c0_68 = arith.constant 0 : index
      %c0_69 = arith.constant 0 : index
      %c1024_70 = arith.constant 1024 : index
      %133 = vector.load %arg6[%c0_68, %c0_69, %c1024_70] : memref<1x8x1408xf32, #tpu.memory_space<vmem>>, vector<1x8x128xf32>
      %134 = vector.shape_cast %133 : vector<1x8x128xf32> to vector<8x128xf32>
      %135 = vector.shape_cast %132 : vector<8x128xf32> to vector<1x8x128xf32>
      tpu.vector_store %arg6[%c0_68, %c0_69, %c1024_70], %135 {strides = array<i32>} : memref<1x8x1408xf32, #tpu.memory_space<vmem>>, vector<1x8x128xf32>,
      %c0_71 = arith.constant 0 : index
      %c0_72 = arith.constant 0 : index
      %c1152 = arith.constant 1152 : index
      %136 = vector.load %arg6[%c0_71, %c0_72, %c1152] : memref<1x8x1408xf32, #tpu.memory_space<vmem>>, vector<1x8x128xf32>
      %137 = vector.shape_cast %136 : vector<1x8x128xf32> to vector<8x128xf32>
      %138 = arith.addf %137, %80 : vector<8x128xf32>
      %c0_73 = arith.constant 0 : index
      %c0_74 = arith.constant 0 : index
      %c1152_75 = arith.constant 1152 : index
      %139 = vector.load %arg6[%c0_73, %c0_74, %c1152_75] : memref<1x8x1408xf32, #tpu.memory_space<vmem>>, vector<1x8x128xf32>
      %140 = vector.shape_cast %139 : vector<1x8x128xf32> to vector<8x128xf32>
      %141 = vector.shape_cast %138 : vector<8x128xf32> to vector<1x8x128xf32>
      tpu.vector_store %arg6[%c0_73, %c0_74, %c1152_75], %141 {strides = array<i32>} : memref<1x8x1408xf32, #tpu.memory_space<vmem>>, vector<1x8x128xf32>,
      %c0_76 = arith.constant 0 : index
      %c0_77 = arith.constant 0 : index
      %c1280 = arith.constant 1280 : index
      %142 = vector.load %arg6[%c0_76, %c0_77, %c1280] : memref<1x8x1408xf32, #tpu.memory_space<vmem>>, vector<1x8x128xf32>
      %143 = vector.shape_cast %142 : vector<1x8x128xf32> to vector<8x128xf32>
      %144 = arith.addf %143, %81 : vector<8x128xf32>
      %c0_78 = arith.constant 0 : index
      %c0_79 = arith.constant 0 : index
      %c1280_80 = arith.constant 1280 : index
      %145 = vector.load %arg6[%c0_78, %c0_79, %c1280_80] : memref<1x8x1408xf32, #tpu.memory_space<vmem>>, vector<1x8x128xf32>
      %146 = vector.shape_cast %145 : vector<1x8x128xf32> to vector<8x128xf32>
      %147 = vector.shape_cast %144 : vector<8x128xf32> to vector<1x8x128xf32>
      tpu.vector_store %arg6[%c0_78, %c0_79, %c1280_80], %147 {strides = array<i32>} : memref<1x8x1408xf32, #tpu.memory_space<vmem>>, vector<1x8x128xf32>,
    } else {
    }
    %true = arith.constant true
    %10 = arith.xori %7, %true : i1
    %c512_i32_3 = arith.constant 512 : i32
    %11 = arith.cmpi slt, %2, %c512_i32_3 : i32
    %12 = arith.andi %10, %11 : i1
    %13 = arith.extui %12 : i1 to i32
    %c0_i32_4 = arith.constant 0 : i32
    %14 = arith.cmpi ne, %13, %c0_i32_4 : i32
    scf.if %14 {
      %15 = tpu.iota {dimensions = array<i32: 1>} : vector<8x128xi32>
      %cst = arith.constant 0.000000e+00 : f32
      %16 = vector.broadcast %cst : f32 to vector<8x128xf32>
      %cst_5 = arith.constant 0.000000e+00 : f32
      %17 = vector.broadcast %cst_5 : f32 to vector<8x128xf32>
      %cst_6 = arith.constant 0.000000e+00 : f32
      %18 = vector.broadcast %cst_6 : f32 to vector<8x128xf32>
      %cst_7 = arith.constant 0.000000e+00 : f32
      %19 = vector.broadcast %cst_7 : f32 to vector<8x128xf32>
      %cst_8 = arith.constant 0.000000e+00 : f32
      %20 = vector.broadcast %cst_8 : f32 to vector<8x128xf32>
      %cst_9 = arith.constant 0.000000e+00 : f32
      %21 = vector.broadcast %cst_9 : f32 to vector<8x128xf32>
      %cst_10 = arith.constant 0.000000e+00 : f32
      %22 = vector.broadcast %cst_10 : f32 to vector<8x128xf32>
      %cst_11 = arith.constant 0.000000e+00 : f32
      %23 = vector.broadcast %cst_11 : f32 to vector<8x128xf32>
      %cst_12 = arith.constant 0.000000e+00 : f32
      %24 = vector.broadcast %cst_12 : f32 to vector<8x128xf32>
      %cst_13 = arith.constant 0.000000e+00 : f32
      %25 = vector.broadcast %cst_13 : f32 to vector<8x128xf32>
      %cst_14 = arith.constant 0.000000e+00 : f32
      %26 = vector.broadcast %cst_14 : f32 to vector<8x128xf32>
      %c0_i32_15 = arith.constant 0 : i32
      %c128_i32 = arith.constant 128 : i32
      %27 = arith.muli %c0_i32_15, %c128_i32 : i32
      %28 = tpu.assume_multiple %27, 128 : i32
      %c0 = arith.constant 0 : index
      %29 = arith.index_cast %28 : i32 to index
      %30 = vector.load %arg5[%c0, %29] : memref<8x256xf32, #tpu.memory_space<vmem>>, vector<8x128xf32>
      %c0_16 = arith.constant 0 : index
      %31 = arith.index_cast %28 : i32 to index
      %32 = vector.load %arg2[%c0_16, %31] : memref<8x256xf32, #tpu.memory_space<vmem>>, vector<8x128xf32>
      %c0_17 = arith.constant 0 : index
      %33 = arith.index_cast %28 : i32 to index
      %34 = vector.load %arg3[%c0_17, %33] : memref<8x256xf32, #tpu.memory_space<vmem>>, vector<8x128xf32>
      %c0_18 = arith.constant 0 : index
      %35 = arith.index_cast %28 : i32 to index
      %36 = vector.load %arg4[%c0_18, %35] : memref<8x256xf32, #tpu.memory_space<vmem>>, vector<8x128xf32>
      %c128_i32_19 = arith.constant 128 : i32
      %37 = arith.muli %c0_i32_15, %c128_i32_19 : i32
      %38 = arith.addi %2, %37 : i32
      %39 = vector.broadcast %38 : i32 to vector<8x128xi32>
      %40 = arith.addi %15, %39 : vector<8x128xi32>
      %c512_i32_20 = arith.constant 512 : i32
      %41 = vector.broadcast %c512_i32_20 : i32 to vector<8x128xi32>
      %42 = arith.cmpi slt, %40, %41 : vector<8x128xi32>
      %cst_21 = arith.constant 0.000000e+00 : f32
      %43 = vector.broadcast %cst_21 : f32 to vector<8x128xf32>
      %44 = arith.select %42, %30, %43 : vector<8x128xi1>, vector<8x128xf32>
      %cst_22 = arith.constant 0.000000e+00 : f32
      %45 = vector.broadcast %cst_22 : f32 to vector<8x128xf32>
      %46 = arith.select %42, %32, %45 : vector<8x128xi1>, vector<8x128xf32>
      %cst_23 = arith.constant 0.000000e+00 : f32
      %47 = vector.broadcast %cst_23 : f32 to vector<8x128xf32>
      %48 = arith.select %42, %34, %47 : vector<8x128xi1>, vector<8x128xf32>
      %cst_24 = arith.constant 0.000000e+00 : f32
      %49 = vector.broadcast %cst_24 : f32 to vector<8x128xf32>
      %50 = arith.select %42, %36, %49 : vector<8x128xi1>, vector<8x128xf32>
      %51 = arith.mulf %44, %44 : vector<8x128xf32>
      %52 = arith.mulf %46, %44 : vector<8x128xf32>
      %53 = arith.mulf %46, %46 : vector<8x128xf32>
      %54 = arith.mulf %48, %44 : vector<8x128xf32>
      %55 = arith.mulf %48, %48 : vector<8x128xf32>
      %56 = arith.mulf %50, %44 : vector<8x128xf32>
      %57 = arith.mulf %50, %50 : vector<8x128xf32>
      %58 = arith.addf %16, %44 : vector<8x128xf32>
      %59 = arith.addf %17, %51 : vector<8x128xf32>
      %60 = arith.addf %18, %46 : vector<8x128xf32>
      %61 = arith.addf %19, %52 : vector<8x128xf32>
      %62 = arith.addf %20, %53 : vector<8x128xf32>
      %63 = arith.addf %21, %48 : vector<8x128xf32>
      %64 = arith.addf %22, %54 : vector<8x128xf32>
      %65 = arith.addf %23, %55 : vector<8x128xf32>
      %66 = arith.addf %24, %50 : vector<8x128xf32>
      %67 = arith.addf %25, %56 : vector<8x128xf32>
      %68 = arith.addf %26, %57 : vector<8x128xf32>
      %c1_i32_25 = arith.constant 1 : i32
      %c128_i32_26 = arith.constant 128 : i32
      %69 = arith.muli %c1_i32_25, %c128_i32_26 : i32
      %70 = tpu.assume_multiple %69, 128 : i32
      %c0_27 = arith.constant 0 : index
      %71 = arith.index_cast %70 : i32 to index
      %72 = vector.load %arg5[%c0_27, %71] : memref<8x256xf32, #tpu.memory_space<vmem>>, vector<8x128xf32>
      %c0_28 = arith.constant 0 : index
      %73 = arith.index_cast %70 : i32 to index
      %74 = vector.load %arg2[%c0_28, %73] : memref<8x256xf32, #tpu.memory_space<vmem>>, vector<8x128xf32>
      %c0_29 = arith.constant 0 : index
      %75 = arith.index_cast %70 : i32 to index
      %76 = vector.load %arg3[%c0_29, %75] : memref<8x256xf32, #tpu.memory_space<vmem>>, vector<8x128xf32>
      %c0_30 = arith.constant 0 : index
      %77 = arith.index_cast %70 : i32 to index
      %78 = vector.load %arg4[%c0_30, %77] : memref<8x256xf32, #tpu.memory_space<vmem>>, vector<8x128xf32>
      %c128_i32_31 = arith.constant 128 : i32
      %79 = arith.muli %c1_i32_25, %c128_i32_31 : i32
      %80 = arith.addi %2, %79 : i32
      %81 = vector.broadcast %80 : i32 to vector<8x128xi32>
      %82 = arith.addi %15, %81 : vector<8x128xi32>
      %c512_i32_32 = arith.constant 512 : i32
      %83 = vector.broadcast %c512_i32_32 : i32 to vector<8x128xi32>
      %84 = arith.cmpi slt, %82, %83 : vector<8x128xi32>
      %cst_33 = arith.constant 0.000000e+00 : f32
      %85 = vector.broadcast %cst_33 : f32 to vector<8x128xf32>
      %86 = arith.select %84, %72, %85 : vector<8x128xi1>, vector<8x128xf32>
      %cst_34 = arith.constant 0.000000e+00 : f32
      %87 = vector.broadcast %cst_34 : f32 to vector<8x128xf32>
      %88 = arith.select %84, %74, %87 : vector<8x128xi1>, vector<8x128xf32>
      %cst_35 = arith.constant 0.000000e+00 : f32
      %89 = vector.broadcast %cst_35 : f32 to vector<8x128xf32>
      %90 = arith.select %84, %76, %89 : vector<8x128xi1>, vector<8x128xf32>
      %cst_36 = arith.constant 0.000000e+00 : f32
      %91 = vector.broadcast %cst_36 : f32 to vector<8x128xf32>
      %92 = arith.select %84, %78, %91 : vector<8x128xi1>, vector<8x128xf32>
      %93 = arith.mulf %86, %86 : vector<8x128xf32>
      %94 = arith.mulf %88, %86 : vector<8x128xf32>
      %95 = arith.mulf %88, %88 : vector<8x128xf32>
      %96 = arith.mulf %90, %86 : vector<8x128xf32>
      %97 = arith.mulf %90, %90 : vector<8x128xf32>
      %98 = arith.mulf %92, %86 : vector<8x128xf32>
      %99 = arith.mulf %92, %92 : vector<8x128xf32>
      %100 = arith.addf %58, %86 : vector<8x128xf32>
      %101 = arith.addf %59, %93 : vector<8x128xf32>
      %102 = arith.addf %60, %88 : vector<8x128xf32>
      %103 = arith.addf %61, %94 : vector<8x128xf32>
      %104 = arith.addf %62, %95 : vector<8x128xf32>
      %105 = arith.addf %63, %90 : vector<8x128xf32>
      %106 = arith.addf %64, %96 : vector<8x128xf32>
      %107 = arith.addf %65, %97 : vector<8x128xf32>
      %108 = arith.addf %66, %92 : vector<8x128xf32>
      %109 = arith.addf %67, %98 : vector<8x128xf32>
      %110 = arith.addf %68, %99 : vector<8x128xf32>
      %c2_i32 = arith.constant 2 : i32
      %c0_37 = arith.constant 0 : index
      %c0_38 = arith.constant 0 : index
      %c0_39 = arith.constant 0 : index
      %111 = vector.load %arg6[%c0_37, %c0_38, %c0_39] : memref<1x8x1408xf32, #tpu.memory_space<vmem>>, vector<1x8x128xf32>
      %112 = vector.shape_cast %111 : vector<1x8x128xf32> to vector<8x128xf32>
      %113 = arith.addf %112, %100 : vector<8x128xf32>
      %c0_40 = arith.constant 0 : index
      %c0_41 = arith.constant 0 : index
      %c0_42 = arith.constant 0 : index
      %114 = vector.load %arg6[%c0_40, %c0_41, %c0_42] : memref<1x8x1408xf32, #tpu.memory_space<vmem>>, vector<1x8x128xf32>
      %115 = vector.shape_cast %114 : vector<1x8x128xf32> to vector<8x128xf32>
      %116 = vector.shape_cast %113 : vector<8x128xf32> to vector<1x8x128xf32>
      tpu.vector_store %arg6[%c0_40, %c0_41, %c0_42], %116 {strides = array<i32>} : memref<1x8x1408xf32, #tpu.memory_space<vmem>>, vector<1x8x128xf32>,
      %c0_43 = arith.constant 0 : index
      %c0_44 = arith.constant 0 : index
      %c128 = arith.constant 128 : index
      %117 = vector.load %arg6[%c0_43, %c0_44, %c128] : memref<1x8x1408xf32, #tpu.memory_space<vmem>>, vector<1x8x128xf32>
      %118 = vector.shape_cast %117 : vector<1x8x128xf32> to vector<8x128xf32>
      %119 = arith.addf %118, %101 : vector<8x128xf32>
      %c0_45 = arith.constant 0 : index
      %c0_46 = arith.constant 0 : index
      %c128_47 = arith.constant 128 : index
      %120 = vector.load %arg6[%c0_45, %c0_46, %c128_47] : memref<1x8x1408xf32, #tpu.memory_space<vmem>>, vector<1x8x128xf32>
      %121 = vector.shape_cast %120 : vector<1x8x128xf32> to vector<8x128xf32>
      %122 = vector.shape_cast %119 : vector<8x128xf32> to vector<1x8x128xf32>
      tpu.vector_store %arg6[%c0_45, %c0_46, %c128_47], %122 {strides = array<i32>} : memref<1x8x1408xf32, #tpu.memory_space<vmem>>, vector<1x8x128xf32>,
      %c0_48 = arith.constant 0 : index
      %c0_49 = arith.constant 0 : index
      %c256 = arith.constant 256 : index
      %123 = vector.load %arg6[%c0_48, %c0_49, %c256] : memref<1x8x1408xf32, #tpu.memory_space<vmem>>, vector<1x8x128xf32>
      %124 = vector.shape_cast %123 : vector<1x8x128xf32> to vector<8x128xf32>
      %125 = arith.addf %124, %102 : vector<8x128xf32>
      %c0_50 = arith.constant 0 : index
      %c0_51 = arith.constant 0 : index
      %c256_52 = arith.constant 256 : index
      %126 = vector.load %arg6[%c0_50, %c0_51, %c256_52] : memref<1x8x1408xf32, #tpu.memory_space<vmem>>, vector<1x8x128xf32>
      %127 = vector.shape_cast %126 : vector<1x8x128xf32> to vector<8x128xf32>
      %128 = vector.shape_cast %125 : vector<8x128xf32> to vector<1x8x128xf32>
      tpu.vector_store %arg6[%c0_50, %c0_51, %c256_52], %128 {strides = array<i32>} : memref<1x8x1408xf32, #tpu.memory_space<vmem>>, vector<1x8x128xf32>,
      %c0_53 = arith.constant 0 : index
      %c0_54 = arith.constant 0 : index
      %c384 = arith.constant 384 : index
      %129 = vector.load %arg6[%c0_53, %c0_54, %c384] : memref<1x8x1408xf32, #tpu.memory_space<vmem>>, vector<1x8x128xf32>
      %130 = vector.shape_cast %129 : vector<1x8x128xf32> to vector<8x128xf32>
      %131 = arith.addf %130, %103 : vector<8x128xf32>
      %c0_55 = arith.constant 0 : index
      %c0_56 = arith.constant 0 : index
      %c384_57 = arith.constant 384 : index
      %132 = vector.load %arg6[%c0_55, %c0_56, %c384_57] : memref<1x8x1408xf32, #tpu.memory_space<vmem>>, vector<1x8x128xf32>
      %133 = vector.shape_cast %132 : vector<1x8x128xf32> to vector<8x128xf32>
      %134 = vector.shape_cast %131 : vector<8x128xf32> to vector<1x8x128xf32>
      tpu.vector_store %arg6[%c0_55, %c0_56, %c384_57], %134 {strides = array<i32>} : memref<1x8x1408xf32, #tpu.memory_space<vmem>>, vector<1x8x128xf32>,
      %c0_58 = arith.constant 0 : index
      %c0_59 = arith.constant 0 : index
      %c512 = arith.constant 512 : index
      %135 = vector.load %arg6[%c0_58, %c0_59, %c512] : memref<1x8x1408xf32, #tpu.memory_space<vmem>>, vector<1x8x128xf32>
      %136 = vector.shape_cast %135 : vector<1x8x128xf32> to vector<8x128xf32>
      %137 = arith.addf %136, %104 : vector<8x128xf32>
      %c0_60 = arith.constant 0 : index
      %c0_61 = arith.constant 0 : index
      %c512_62 = arith.constant 512 : index
      %138 = vector.load %arg6[%c0_60, %c0_61, %c512_62] : memref<1x8x1408xf32, #tpu.memory_space<vmem>>, vector<1x8x128xf32>
      %139 = vector.shape_cast %138 : vector<1x8x128xf32> to vector<8x128xf32>
      %140 = vector.shape_cast %137 : vector<8x128xf32> to vector<1x8x128xf32>
      tpu.vector_store %arg6[%c0_60, %c0_61, %c512_62], %140 {strides = array<i32>} : memref<1x8x1408xf32, #tpu.memory_space<vmem>>, vector<1x8x128xf32>,
      %c0_63 = arith.constant 0 : index
      %c0_64 = arith.constant 0 : index
      %c640 = arith.constant 640 : index
      %141 = vector.load %arg6[%c0_63, %c0_64, %c640] : memref<1x8x1408xf32, #tpu.memory_space<vmem>>, vector<1x8x128xf32>
      %142 = vector.shape_cast %141 : vector<1x8x128xf32> to vector<8x128xf32>
      %143 = arith.addf %142, %105 : vector<8x128xf32>
      %c0_65 = arith.constant 0 : index
      %c0_66 = arith.constant 0 : index
      %c640_67 = arith.constant 640 : index
      %144 = vector.load %arg6[%c0_65, %c0_66, %c640_67] : memref<1x8x1408xf32, #tpu.memory_space<vmem>>, vector<1x8x128xf32>
      %145 = vector.shape_cast %144 : vector<1x8x128xf32> to vector<8x128xf32>
      %146 = vector.shape_cast %143 : vector<8x128xf32> to vector<1x8x128xf32>
      tpu.vector_store %arg6[%c0_65, %c0_66, %c640_67], %146 {strides = array<i32>} : memref<1x8x1408xf32, #tpu.memory_space<vmem>>, vector<1x8x128xf32>,
      %c0_68 = arith.constant 0 : index
      %c0_69 = arith.constant 0 : index
      %c768 = arith.constant 768 : index
      %147 = vector.load %arg6[%c0_68, %c0_69, %c768] : memref<1x8x1408xf32, #tpu.memory_space<vmem>>, vector<1x8x128xf32>
      %148 = vector.shape_cast %147 : vector<1x8x128xf32> to vector<8x128xf32>
      %149 = arith.addf %148, %106 : vector<8x128xf32>
      %c0_70 = arith.constant 0 : index
      %c0_71 = arith.constant 0 : index
      %c768_72 = arith.constant 768 : index
      %150 = vector.load %arg6[%c0_70, %c0_71, %c768_72] : memref<1x8x1408xf32, #tpu.memory_space<vmem>>, vector<1x8x128xf32>
      %151 = vector.shape_cast %150 : vector<1x8x128xf32> to vector<8x128xf32>
      %152 = vector.shape_cast %149 : vector<8x128xf32> to vector<1x8x128xf32>
      tpu.vector_store %arg6[%c0_70, %c0_71, %c768_72], %152 {strides = array<i32>} : memref<1x8x1408xf32, #tpu.memory_space<vmem>>, vector<1x8x128xf32>,
      %c0_73 = arith.constant 0 : index
      %c0_74 = arith.constant 0 : index
      %c896 = arith.constant 896 : index
      %153 = vector.load %arg6[%c0_73, %c0_74, %c896] : memref<1x8x1408xf32, #tpu.memory_space<vmem>>, vector<1x8x128xf32>
      %154 = vector.shape_cast %153 : vector<1x8x128xf32> to vector<8x128xf32>
      %155 = arith.addf %154, %107 : vector<8x128xf32>
      %c0_75 = arith.constant 0 : index
      %c0_76 = arith.constant 0 : index
      %c896_77 = arith.constant 896 : index
      %156 = vector.load %arg6[%c0_75, %c0_76, %c896_77] : memref<1x8x1408xf32, #tpu.memory_space<vmem>>, vector<1x8x128xf32>
      %157 = vector.shape_cast %156 : vector<1x8x128xf32> to vector<8x128xf32>
      %158 = vector.shape_cast %155 : vector<8x128xf32> to vector<1x8x128xf32>
      tpu.vector_store %arg6[%c0_75, %c0_76, %c896_77], %158 {strides = array<i32>} : memref<1x8x1408xf32, #tpu.memory_space<vmem>>, vector<1x8x128xf32>,
      %c0_78 = arith.constant 0 : index
      %c0_79 = arith.constant 0 : index
      %c1024 = arith.constant 1024 : index
      %159 = vector.load %arg6[%c0_78, %c0_79, %c1024] : memref<1x8x1408xf32, #tpu.memory_space<vmem>>, vector<1x8x128xf32>
      %160 = vector.shape_cast %159 : vector<1x8x128xf32> to vector<8x128xf32>
      %161 = arith.addf %160, %108 : vector<8x128xf32>
      %c0_80 = arith.constant 0 : index
      %c0_81 = arith.constant 0 : index
      %c1024_82 = arith.constant 1024 : index
      %162 = vector.load %arg6[%c0_80, %c0_81, %c1024_82] : memref<1x8x1408xf32, #tpu.memory_space<vmem>>, vector<1x8x128xf32>
      %163 = vector.shape_cast %162 : vector<1x8x128xf32> to vector<8x128xf32>
      %164 = vector.shape_cast %161 : vector<8x128xf32> to vector<1x8x128xf32>
      tpu.vector_store %arg6[%c0_80, %c0_81, %c1024_82], %164 {strides = array<i32>} : memref<1x8x1408xf32, #tpu.memory_space<vmem>>, vector<1x8x128xf32>,
      %c0_83 = arith.constant 0 : index
      %c0_84 = arith.constant 0 : index
      %c1152 = arith.constant 1152 : index
      %165 = vector.load %arg6[%c0_83, %c0_84, %c1152] : memref<1x8x1408xf32, #tpu.memory_space<vmem>>, vector<1x8x128xf32>
      %166 = vector.shape_cast %165 : vector<1x8x128xf32> to vector<8x128xf32>
      %167 = arith.addf %166, %109 : vector<8x128xf32>
      %c0_85 = arith.constant 0 : index
      %c0_86 = arith.constant 0 : index
      %c1152_87 = arith.constant 1152 : index
      %168 = vector.load %arg6[%c0_85, %c0_86, %c1152_87] : memref<1x8x1408xf32, #tpu.memory_space<vmem>>, vector<1x8x128xf32>
      %169 = vector.shape_cast %168 : vector<1x8x128xf32> to vector<8x128xf32>
      %170 = vector.shape_cast %167 : vector<8x128xf32> to vector<1x8x128xf32>
      tpu.vector_store %arg6[%c0_85, %c0_86, %c1152_87], %170 {strides = array<i32>} : memref<1x8x1408xf32, #tpu.memory_space<vmem>>, vector<1x8x128xf32>,
      %c0_88 = arith.constant 0 : index
      %c0_89 = arith.constant 0 : index
      %c1280 = arith.constant 1280 : index
      %171 = vector.load %arg6[%c0_88, %c0_89, %c1280] : memref<1x8x1408xf32, #tpu.memory_space<vmem>>, vector<1x8x128xf32>
      %172 = vector.shape_cast %171 : vector<1x8x128xf32> to vector<8x128xf32>
      %173 = arith.addf %172, %110 : vector<8x128xf32>
      %c0_90 = arith.constant 0 : index
      %c0_91 = arith.constant 0 : index
      %c1280_92 = arith.constant 1280 : index
      %174 = vector.load %arg6[%c0_90, %c0_91, %c1280_92] : memref<1x8x1408xf32, #tpu.memory_space<vmem>>, vector<1x8x128xf32>
      %175 = vector.shape_cast %174 : vector<1x8x128xf32> to vector<8x128xf32>
      %176 = vector.shape_cast %173 : vector<8x128xf32> to vector<1x8x128xf32>
      tpu.vector_store %arg6[%c0_90, %c0_91, %c1280_92], %176 {strides = array<i32>} : memref<1x8x1408xf32, #tpu.memory_space<vmem>>, vector<1x8x128xf32>,
    } else {
    }
    return
  }
  func.func @transform_0(%arg0: i32, %arg1: i32) -> (i32, i32) {
    %c1_i32 = arith.constant 1 : i32
    %0 = arith.muli %arg0, %c1_i32 : i32
    %1 = arith.addi %0, %arg1 : i32
    %c1_i32_0 = arith.constant 1 : i32
    %2 = arith.minsi %1, %c1_i32_0 : i32
    %c0_i32 = arith.constant 0 : i32
    %c0_i32_1 = arith.constant 0 : i32
    return %c0_i32, %2 : i32, i32
  }
  func.func @transform_1(%arg0: i32, %arg1: i32) -> (i32, i32) {
    %c1_i32 = arith.constant 1 : i32
    %0 = arith.muli %arg0, %c1_i32 : i32
    %1 = arith.addi %0, %arg1 : i32
    %c1_i32_0 = arith.constant 1 : i32
    %2 = arith.minsi %1, %c1_i32_0 : i32
    %c0_i32 = arith.constant 0 : i32
    %c0_i32_1 = arith.constant 0 : i32
    return %c0_i32, %2 : i32, i32
  }
  func.func @transform_2(%arg0: i32, %arg1: i32) -> (i32, i32) {
    %c1_i32 = arith.constant 1 : i32
    %0 = arith.muli %arg0, %c1_i32 : i32
    %1 = arith.addi %0, %arg1 : i32
    %c1_i32_0 = arith.constant 1 : i32
    %2 = arith.minsi %1, %c1_i32_0 : i32
    %c0_i32 = arith.constant 0 : i32
    %c0_i32_1 = arith.constant 0 : i32
    return %c0_i32, %2 : i32, i32
  }
  func.func @transform_3(%arg0: i32, %arg1: i32) -> (i32, i32) {
    %c1_i32 = arith.constant 1 : i32
    %0 = arith.muli %arg0, %c1_i32 : i32
    %1 = arith.addi %0, %arg1 : i32
    %c1_i32_0 = arith.constant 1 : i32
    %2 = arith.minsi %1, %c1_i32_0 : i32
    %c0_i32 = arith.constant 0 : i32
    %c0_i32_1 = arith.constant 0 : i32
    return %c0_i32, %2 : i32, i32
  }
  func.func @transform_4(%arg0: i32, %arg1: i32) -> (i32, i32, i32) {
    %c0_i32 = arith.constant 0 : i32
    %c0_i32_0 = arith.constant 0 : i32
    %c0_i32_1 = arith.constant 0 : i32
    return %arg0, %c0_i32, %c0_i32_0 : i32, i32, i32
  }
}

</mosaic_0001>

<llo_original>
// kernel: tpu_custom_call.1
$region0: #{tpu_custom_call.1}
  #allocation0 [shape = 'u32[]', space=smem, size = 0x4, offset = 0x4, fixed_abs, tag = 'smem constant byte address 0x4 - core index']
  #allocation1 [shape = 'u32[144,128]{1,0:T(1,128)}', space=vmem, size = 0x12000, scoped, tag = 'internal scratch']
  %s0 = inlined_call_operand.hbm [shape: f32[8,512], index: 0, kind: input, shape index: {}]
  %s1 = inlined_call_operand.hbm [shape: f32[8,512], index: 1, kind: input, shape index: {}]
  %s2 = inlined_call_operand.hbm [shape: f32[8,512], index: 2, kind: input, shape index: {}]
  %s3 = inlined_call_operand.hbm [shape: f32[8,512], index: 3, kind: input, shape index: {}]
  %s4 = inlined_call_operand.hbm [shape: f32[2,8,1408], index: 4, kind: output, shape index: {}]
  %s5 = sld [smem:[#allocation0]]
  $region77: #{tpu_custom_call.1} parent=0
    _
  %s7 = ssub.s32 1, %s5
  %s8 = scalar_select 0, %s7, %s5
  $region1: #{tpu_custom_call.1} parent=0
    #allocation2 [shape = 'u8[16384]{0}', space=vmem, size = 0x4000, scoped, tag = 'input window, operand 0']
    #allocation3 [shape = 's32[2]{0}', space=sflag, size = 0x8, scoped, tag = 'scoped memory for tpu_custom_call.1']
    #allocation4 [shape = 's32[2]{0}', space=sflag, size = 0x8, scoped, tag = 'scoped memory for tpu_custom_call.1']
    #allocation5 [shape = 'u8[16384]{0}', space=vmem, size = 0x4000, scoped, tag = 'input window, operand 1']
    #allocation6 [shape = 's32[2]{0}', space=sflag, size = 0x8, scoped, tag = 'scoped memory for tpu_custom_call.1']
    #allocation7 [shape = 'u8[16384]{0}', space=vmem, size = 0x4000, scoped, tag = 'input window, operand 2']
    #allocation8 [shape = 'u8[16384]{0}', space=vmem, size = 0x4000, scoped, tag = 'input window, operand 3']
    #allocation9 [shape = 's32[2]{0}', space=sflag, size = 0x8, scoped, tag = 'scoped memory for tpu_custom_call.1']
    #allocation10 [shape = 'u8[90112]{0}', space=vmem, size = 0x16000, scoped, tag = 'output window, operand 0']
    %9 = vsyncpa [#allocation3], 0
    %s10 = scalar_lea.sflag [#allocation3], 1
    %11 = vsyncpa %s10, 0
    %12 = vsyncpa [#allocation6], 0
    %s13 = scalar_lea.sflag [#allocation6], 1
    %14 = vsyncpa %s13, 0
    %15 = vsyncpa [#allocation9], 0
    %s16 = scalar_lea.sflag [#allocation9], 1
    %17 = vsyncpa %s16, 0
    %18 = vsyncpa [#allocation4], 0
    %s19 = scalar_lea.sflag [#allocation4], 1
    %20 = vsyncpa %s19, 0
    loop: start=0, step=1, limit=4
    $region2: #{tpu_custom_call.1} parent=1 // loop_pre_header
      _
    $region3: #{tpu_custom_call.1} parent=1 // loop_header
      %s22 = sphi 0, %s26
      %p23 = scmp.ge.s32.totalorder %s22, 4
      %s29 = sphi 0, %s41
      %s30 = sphi 0, %s37
      %s31 = sphi 0, %s29
      %s32 = sphi 0, %s30
      %s33 = sphi 0, %s31
      %s34 = sphi 0, %s32
      %s50 = sphi 0, %s52
      %s53 = sphi 0, %s50
      %s54 = sphi 0, %s53
      %s70 = sphi 0, %s54
      %s82 = sphi 0, %s84
      %s85 = sphi 0, %s82
      %s86 = sphi 0, %s85
      %s102 = sphi 0, %s86
      %s114 = sphi 0, %s116
      %s117 = sphi 0, %s114
      %s118 = sphi 0, %s117
      %s134 = sphi 0, %s118
      %s146 = sphi 0, %s148
      %s149 = sphi 0, %s146
      %s150 = sphi 0, %s149
      %s166 = sphi 0, %s150
      %s172 = sphi 0, %s174
      %s175 = sphi 0, %s172
      %s176 = sphi 0, %s175
      %s192 = sphi 0, %s176
    $region4: #{tpu_custom_call.1} parent=1 // loop_header_branch
      %25 = sbr.rel (%p23) target = $region8
    $region5: #{tpu_custom_call.1} parent=1 // loop_body
      %s27 = ssub.s32 %s22, 1
      %s28 = ssub.s32 %s22, 2
      %s35 = sadd.s32 1, %s30
      %p36 = scmp.ge.s32.totalorder %s35, 1
      %s37 = scalar_select %p36, 0, %s35
      %s38 = sadd.s32 1, %s29
      %s39 = scalar_select %p36, %s38, %s29
      %p40 = scmp.ge.s32.totalorder %s39, 2
      %s41 = scalar_select %p40, 0, %s39
      %s42 = sadd.s32 %s29, %s30
      %p43 = scmp.lt.s32.totalorder %s42, 1
      %s44 = scalar_select %p43, %s42, 1
      %s45 = sadd.s32 %s41, %s37
      %p46 = scmp.lt.s32.totalorder %s45, 1
      %s47 = scalar_select %p46, %s45, 1
      %s48 = ssub.s32 %s44, %s47
      %p49 = scmp.eq.s32.totalorder %s48, 0
      %s51 = sadd.s32 %s50, 1
      %s52 = scalar_select %p49, %s50, %s51
      %p55 = pneg %p49
      %p56 = scmp.eq.s32.totalorder %s22, 1
      %p57 = por %p55, %p56
      %p58 = scmp.ne.s32.totalorder %s50, %s53
      %p59 = scmp.eq.s32.totalorder %s22, 0
      %p60 = por %p58, %p59
      %p61 = scmp.ne.s32.totalorder %s50, %s53
      %p62 = scmp.eq.s32.totalorder %s27, 1
      %p63 = por %p61, %p62
      %p64 = scmp.ne.s32.totalorder %s53, %s54
      %p65 = scmp.eq.s32.totalorder %s27, 0
      %p66 = por %p64, %p65
      %p67 = scmp.ne.s32.totalorder %s53, %s54
      %p68 = scmp.eq.s32.totalorder %s28, 1
      %p69 = por %p67, %p68
      %p71 = scmp.ne.s32.totalorder %s54, %s70
      %p72 = scmp.eq.s32.totalorder %s28, 0
      %p73 = por %p71, %p72
      %s74 = sadd.s32 %s29, %s30
      %p75 = scmp.lt.s32.totalorder %s74, 1
      %s76 = scalar_select %p75, %s74, 1
      %s77 = sadd.s32 %s41, %s37
      %p78 = scmp.lt.s32.totalorder %s77, 1
      %s79 = scalar_select %p78, %s77, 1
      %s80 = ssub.s32 %s76, %s79
      %p81 = scmp.eq.s32.totalorder %s80, 0
      %s83 = sadd.s32 %s82, 1
      %s84 = scalar_select %p81, %s82, %s83
      %p87 = pneg %p81
      %p88 = scmp.eq.s32.totalorder %s22, 1
      %p89 = por %p87, %p88
      %p90 = scmp.ne.s32.totalorder %s82, %s85
      %p91 = scmp.eq.s32.totalorder %s22, 0
      %p92 = por %p90, %p91
      %p93 = scmp.ne.s32.totalorder %s82, %s85
      %p94 = scmp.eq.s32.totalorder %s27, 1
      %p95 = por %p93, %p94
      %p96 = scmp.ne.s32.totalorder %s85, %s86
      %p97 = scmp.eq.s32.totalorder %s27, 0
      %p98 = por %p96, %p97
      %p99 = scmp.ne.s32.totalorder %s85, %s86
      %p100 = scmp.eq.s32.totalorder %s28, 1
      %p101 = por %p99, %p100
      %p103 = scmp.ne.s32.totalorder %s86, %s102
      %p104 = scmp.eq.s32.totalorder %s28, 0
      %p105 = por %p103, %p104
      %s106 = sadd.s32 %s29, %s30
      %p107 = scmp.lt.s32.totalorder %s106, 1
      %s108 = scalar_select %p107, %s106, 1
      %s109 = sadd.s32 %s41, %s37
      %p110 = scmp.lt.s32.totalorder %s109, 1
      %s111 = scalar_select %p110, %s109, 1
      %s112 = ssub.s32 %s108, %s111
      %p113 = scmp.eq.s32.totalorder %s112, 0
      %s115 = sadd.s32 %s114, 1
      %s116 = scalar_select %p113, %s114, %s115
      %p119 = pneg %p113
      %p120 = scmp.eq.s32.totalorder %s22, 1
      %p121 = por %p119, %p120
      %p122 = scmp.ne.s32.totalorder %s114, %s117
      %p123 = scmp.eq.s32.totalorder %s22, 0
      %p124 = por %p122, %p123
      %p125 = scmp.ne.s32.totalorder %s114, %s117
      %p126 = scmp.eq.s32.totalorder %s27, 1
      %p127 = por %p125, %p126
      %p128 = scmp.ne.s32.totalorder %s117, %s118
      %p129 = scmp.eq.s32.totalorder %s27, 0
      %p130 = por %p128, %p129
      %p131 = scmp.ne.s32.totalorder %s117, %s118
      %p132 = scmp.eq.s32.totalorder %s28, 1
      %p133 = por %p131, %p132
      %p135 = scmp.ne.s32.totalorder %s118, %s134
      %p136 = scmp.eq.s32.totalorder %s28, 0
      %p137 = por %p135, %p136
      %s138 = sadd.s32 %s29, %s30
      %p139 = scmp.lt.s32.totalorder %s138, 1
      %s140 = scalar_select %p139, %s138, 1
      %s141 = sadd.s32 %s41, %s37
      %p142 = scmp.lt.s32.totalorder %s141, 1
      %s143 = scalar_select %p142, %s141, 1
      %s144 = ssub.s32 %s140, %s143
      %p145 = scmp.eq.s32.totalorder %s144, 0
      %s147 = sadd.s32 %s146, 1
      %s148 = scalar_select %p145, %s146, %s147
      %p151 = pneg %p145
      %p152 = scmp.eq.s32.totalorder %s22, 1
      %p153 = por %p151, %p152
      %p154 = scmp.ne.s32.totalorder %s146, %s149
      %p155 = scmp.eq.s32.totalorder %s22, 0
      %p156 = por %p154, %p155
      %p157 = scmp.ne.s32.totalorder %s146, %s149
      %p158 = scmp.eq.s32.totalorder %s27, 1
      %p159 = por %p157, %p158
      %p160 = scmp.ne.s32.totalorder %s149, %s150
      %p161 = scmp.eq.s32.totalorder %s27, 0
      %p162 = por %p160, %p161
      %p163 = scmp.ne.s32.totalorder %s149, %s150
      %p164 = scmp.eq.s32.totalorder %s28, 1
      %p165 = por %p163, %p164
      %p167 = scmp.ne.s32.totalorder %s150, %s166
      %p168 = scmp.eq.s32.totalorder %s28, 0
      %p169 = por %p167, %p168
      %s170 = ssub.s32 %s29, %s41
      %p171 = scmp.eq.s32.totalorder %s170, 0
      %s173 = sadd.s32 %s172, 1
      %s174 = scalar_select %p171, %s172, %s173
      %p177 = pneg %p171
      %p178 = scmp.eq.s32.totalorder %s22, 1
      %p179 = por %p177, %p178
      %p180 = scmp.ne.s32.totalorder %s172, %s175
      %p181 = scmp.eq.s32.totalorder %s22, 0
      %p182 = por %p180, %p181
      %p183 = scmp.ne.s32.totalorder %s172, %s175
      %p184 = scmp.eq.s32.totalorder %s27, 1
      %p185 = por %p183, %p184
      %p186 = scmp.ne.s32.totalorder %s175, %s176
      %p187 = scmp.eq.s32.totalorder %s27, 0
      %p188 = por %p186, %p187
      %p189 = scmp.ne.s32.totalorder %s175, %s176
      %p190 = scmp.eq.s32.totalorder %s28, 1
      %p191 = por %p189, %p190
      %p193 = scmp.ne.s32.totalorder %s176, %s192
      %p194 = scmp.eq.s32.totalorder %s28, 0
      %p195 = por %p193, %p194
      %p196 = scmp.le.s32.totalorder 1, %s22
      %p197 = scmp.lt.s32.totalorder %s22, 3
      %p198 = pnand %p196, %p197
      %p199 = pneg %p198
      // Predicated region
      $region9: #{tpu_custom_call.1} parent=5 // pred_check
        _
      $region10: #{tpu_custom_call.1} parent=5 // pred_check_branch
        %201 = sbr.rel (%p198) target = $region12
      $region11: #{tpu_custom_call.1} parent=5 // pred_region
        %s202 = ssub.s32 %s22, 1
      $region12: #{tpu_custom_call.1} parent=5 // pred_fallthru
        _
      %p203 = scmp.lt.s32.totalorder %s22, 2
      // Predicated region
      $region13: #{tpu_custom_call.1} parent=5 // pred_check
        %p204 = pneg %p203
      $region14: #{tpu_custom_call.1} parent=5 // pred_check_branch
        %206 = sbr.rel (%p204) target = $region16
      $region15: #{tpu_custom_call.1} parent=5 // pred_region
        // Predicated region
        $region17: #{tpu_custom_call.1} parent=15 // pred_check
          %p207 = pneg %p60
        $region18: #{tpu_custom_call.1} parent=15 // pred_check_branch
          %209 = sbr.rel (%p207) target = $region20
        $region19: #{tpu_custom_call.1} parent=15 // pred_region
          %s210 = sand.u32 %s50, 1
          %s211 = scalar_lea.sflag [#allocation3], %s210
          %s212 = sand.u32 %s50, 1
          %s213 = smul.addr %s212, 16
          %s214 = scalar_lea.vmem [#allocation2], %s213
          %s215 = sadd.s32 %s29, %s30
          %p216 = scmp.lt.s32.totalorder %s215, 1
          %s217 = scalar_select %p216, %s215, 1
          %s218 = smul.u32 2, %s217
          %s220 = ssub.s32 256, 256
          %221 = vsyncadd %s211, %s220
          %s222 = smul.addr %s218, 128
          %s223 = scalar_lea.hbm %s0, %s222
          %s225 = sshll.u32 %s214, 4
          %s226 = int_to_ptr.vmem [resolvable:$true] %s225
          %228 = dma.hbm_to_vmem [thread:$0]  %s223, 256, %s226, %s211
        $region20: #{tpu_custom_call.1} parent=15 // pred_fallthru
          _
        // Predicated region
        $region21: #{tpu_custom_call.1} parent=15 // pred_check
          %p229 = pneg %p92
        $region22: #{tpu_custom_call.1} parent=15 // pred_check_branch
          %231 = sbr.rel (%p229) target = $region24
        $region23: #{tpu_custom_call.1} parent=15 // pred_region
          %s232 = sand.u32 %s22, 1
          %s233 = scalar_lea.sflag [#allocation6], %s232
          %s234 = sand.u32 %s82, 1
          %s235 = smul.addr %s234, 16
          %s236 = scalar_lea.vmem [#allocation5], %s235
          %s237 = sadd.s32 %s29, %s30
          %p238 = scmp.lt.s32.totalorder %s237, 1
          %s239 = scalar_select %p238, %s237, 1
          %s240 = smul.u32 2, %s239
          %s242 = ssub.s32 256, 256
          %243 = vsyncadd %s233, %s242
          %s244 = smul.addr %s240, 128
          %s245 = scalar_lea.hbm %s1, %s244
          %s247 = sshll.u32 %s236, 4
          %s248 = int_to_ptr.vmem [resolvable:$true] %s247
          %250 = dma.hbm_to_vmem [thread:$0]  %s245, 256, %s248, %s233
        $region24: #{tpu_custom_call.1} parent=15 // pred_fallthru
          _
        // Predicated region
        $region25: #{tpu_custom_call.1} parent=15 // pred_check
          %p251 = pneg %p124
        $region26: #{tpu_custom_call.1} parent=15 // pred_check_branch
          %253 = sbr.rel (%p251) target = $region28
        $region27: #{tpu_custom_call.1} parent=15 // pred_region
          %s254 = sand.u32 %s22, 1
          %s255 = scalar_lea.sflag [#allocation6], %s254
          %s256 = sand.u32 %s114, 1
          %s257 = smul.addr %s256, 16
          %s258 = scalar_lea.vmem [#allocation7], %s257
          %s259 = sadd.s32 %s29, %s30
          %p260 = scmp.lt.s32.totalorder %s259, 1
          %s261 = scalar_select %p260, %s259, 1
          %s262 = smul.u32 2, %s261
          %s264 = ssub.s32 256, 256
          %265 = vsyncadd %s255, %s264
          %s266 = smul.addr %s262, 128
          %s267 = scalar_lea.hbm %s2, %s266
          %s269 = sshll.u32 %s258, 4
          %s270 = int_to_ptr.vmem [resolvable:$true] %s269
          %272 = dma.hbm_to_vmem [thread:$0]  %s267, 256, %s270, %s255
        $region28: #{tpu_custom_call.1} parent=15 // pred_fallthru
          _
        // Predicated region
        $region29: #{tpu_custom_call.1} parent=15 // pred_check
          %p273 = pneg %p156
        $region30: #{tpu_custom_call.1} parent=15 // pred_check_branch
          %275 = sbr.rel (%p273) target = $region32
        $region31: #{tpu_custom_call.1} parent=15 // pred_region
          %s276 = sand.u32 %s146, 1
          %s277 = scalar_lea.sflag [#allocation9], %s276
          %s278 = sand.u32 %s146, 1
          %s279 = smul.addr %s278, 16
          %s280 = scalar_lea.vmem [#allocation8], %s279
          %s281 = sadd.s32 %s29, %s30
          %p282 = scmp.lt.s32.totalorder %s281, 1
          %s283 = scalar_select %p282, %s281, 1
          %s284 = smul.u32 2, %s283
          %s286 = ssub.s32 256, 256
          %287 = vsyncadd %s277, %s286
          %s288 = smul.addr %s284, 128
          %s289 = scalar_lea.hbm %s3, %s288
          %s291 = sshll.u32 %s280, 4
          %s292 = int_to_ptr.vmem [resolvable:$true] %s291
          %294 = dma.hbm_to_vmem [thread:$0]  %s289, 256, %s292, %s277
        $region32: #{tpu_custom_call.1} parent=15 // pred_fallthru
          _
      $region16: #{tpu_custom_call.1} parent=5 // pred_fallthru
        _
      %p295 = scmp.le.s32.totalorder 1, %s22
      %p296 = scmp.lt.s32.totalorder %s22, 3
      %p297 = pnand %p295, %p296
      %p298 = pneg %p297
      // Predicated region
      $region33: #{tpu_custom_call.1} parent=5 // pred_check
        _
      $region34: #{tpu_custom_call.1} parent=5 // pred_check_branch
        %300 = sbr.rel (%p297) target = $region36
      $region35: #{tpu_custom_call.1} parent=5 // pred_region
        %s301 = ssub.s32 %s22, 1
        %s302 = sand.u32 %s53, 1
        %s303 = scalar_lea.sflag [#allocation3], %s302
        %s304 = sand.u32 %s53, 1
        %s305 = smul.addr %s304, 16
        %s306 = scalar_lea.vmem [#allocation2], %s305
        // Predicated region
        $region37: #{tpu_custom_call.1} parent=35 // pred_check
          %p307 = pneg %p66
        $region38: #{tpu_custom_call.1} parent=35 // pred_check_branch
          %309 = sbr.rel (%p307) target = $region40
        $region39: #{tpu_custom_call.1} parent=35 // pred_region
          %310 = dma.done %s303, 256
        $region40: #{tpu_custom_call.1} parent=35 // pred_fallthru
          _
        %s311 = sand.u32 %s27, 1
        %s312 = scalar_lea.sflag [#allocation6], %s311
        %s313 = sand.u32 %s85, 1
        %s314 = smul.addr %s313, 16
        %s315 = scalar_lea.vmem [#allocation5], %s314
        // Predicated region
        $region41: #{tpu_custom_call.1} parent=35 // pred_check
          %p316 = pneg %p98
        $region42: #{tpu_custom_call.1} parent=35 // pred_check_branch
          %318 = sbr.rel (%p316) target = $region44
        $region43: #{tpu_custom_call.1} parent=35 // pred_region
          %319 = dma.done %s312, 256
        $region44: #{tpu_custom_call.1} parent=35 // pred_fallthru
          _
        %s320 = sand.u32 %s27, 1
        %s321 = scalar_lea.sflag [#allocation6], %s320
        %s322 = sand.u32 %s117, 1
        %s323 = smul.addr %s322, 16
        %s324 = scalar_lea.vmem [#allocation7], %s323
        // Predicated region
        $region45: #{tpu_custom_call.1} parent=35 // pred_check
          %p325 = pneg %p130
        $region46: #{tpu_custom_call.1} parent=35 // pred_check_branch
          %327 = sbr.rel (%p325) target = $region48
        $region47: #{tpu_custom_call.1} parent=35 // pred_region
          %328 = dma.done %s321, 256
        $region48: #{tpu_custom_call.1} parent=35 // pred_fallthru
          _
        %s329 = sand.u32 %s149, 1
        %s330 = scalar_lea.sflag [#allocation9], %s329
        %s331 = sand.u32 %s149, 1
        %s332 = smul.addr %s331, 16
        %s333 = scalar_lea.vmem [#allocation8], %s332
        // Predicated region
        $region49: #{tpu_custom_call.1} parent=35 // pred_check
          %p334 = pneg %p162
        $region50: #{tpu_custom_call.1} parent=35 // pred_check_branch
          %336 = sbr.rel (%p334) target = $region52
        $region51: #{tpu_custom_call.1} parent=35 // pred_region
          %337 = dma.done %s330, 256
        $region52: #{tpu_custom_call.1} parent=35 // pred_fallthru
          _
        %s338 = sand.u32 %s53, 1
        %s339 = scalar_lea.sflag [#allocation3], %s338
        %s340 = sand.u32 %s53, 1
        %s341 = smul.addr %s340, 16
        %s342 = scalar_lea.vmem [#allocation2], %s341
        %p343 = pneg %p66
        %p344 = pneg %p63
        %s345 = sand.u32 %s27, 1
        %s346 = scalar_lea.sflag [#allocation6], %s345
        %s347 = sand.u32 %s85, 1
        %s348 = smul.addr %s347, 16
        %s349 = scalar_lea.vmem [#allocation5], %s348
        %p350 = pneg %p98
        %p351 = pneg %p95
        %s352 = sand.u32 %s27, 1
        %s353 = scalar_lea.sflag [#allocation6], %s352
        %s354 = sand.u32 %s117, 1
        %s355 = smul.addr %s354, 16
        %s356 = scalar_lea.vmem [#allocation7], %s355
        %p357 = pneg %p130
        %p358 = pneg %p127
        %s359 = sand.u32 %s149, 1
        %s360 = scalar_lea.sflag [#allocation9], %s359
        %s361 = sand.u32 %s149, 1
        %s362 = smul.addr %s361, 16
        %s363 = scalar_lea.vmem [#allocation8], %s362
        %p364 = pneg %p162
        %p365 = pneg %p159
        %p366 = pneg %p188
        %p367 = pneg %p185
        %s368 = sand.u32 %s175, 1
        %s369 = scalar_lea.sflag [#allocation4], %s368
        %s370 = sand.u32 %s175, 1
        %s371 = smul.addr %s370, 88
        %s372 = scalar_lea.vmem [#allocation10], %s371
        %s373 = sadd.s32 %s31, %s32
        %p374 = scmp.lt.s32.totalorder %s373, 1
        %s375 = scalar_select %p374, %s373, 1
        %s376 = smul.u32 2, %s375
        %s377 = sadd.s32 %s31, %s32
        %p378 = scmp.lt.s32.totalorder %s377, 1
        %s379 = scalar_select %p378, %s377, 1
        %s380 = smul.u32 2, %s379
        %s381 = sadd.s32 %s31, %s32
        %p382 = scmp.lt.s32.totalorder %s381, 1
        %s383 = scalar_select %p382, %s381, 1
        %s384 = smul.u32 2, %s383
        %s385 = sadd.s32 %s31, %s32
        %p386 = scmp.lt.s32.totalorder %s385, 1
        %s387 = scalar_select %p386, %s385, 1
        %s388 = smul.u32 2, %s387
        %s389 = sadd.s32 %s31, %s32
        %s390 = smul.u32 %s389, 256
        %p391 = scmp.eq.s32.totalorder %s32, 0
        // Predicated region
        $region53: #{tpu_custom_call.1} parent=35 // pred_check
          %p392 = pneg %p391
        $region54: #{tpu_custom_call.1} parent=35 // pred_check_branch
          %394 = sbr.rel (%p392) target = $region56
        $region55: #{tpu_custom_call.1} parent=35 // pred_region
          %395 = vst [vmem:[%s372] sm:$0xff] 0.0
          %396 = vst [vmem:[%s372 + $0x8] sm:$0xff] 0.0
          %397 = vst [vmem:[%s372 + $0x10] sm:$0xff] 0.0
          %398 = vst [vmem:[%s372 + $0x18] sm:$0xff] 0.0
          %399 = vst [vmem:[%s372 + $0x20] sm:$0xff] 0.0
          %400 = vst [vmem:[%s372 + $0x28] sm:$0xff] 0.0
          %401 = vst [vmem:[%s372 + $0x30] sm:$0xff] 0.0
          %402 = vst [vmem:[%s372 + $0x38] sm:$0xff] 0.0
          %403 = vst [vmem:[%s372 + $0x40] sm:$0xff] 0.0
          %404 = vst [vmem:[%s372 + $0x48] sm:$0xff] 0.0
          %405 = vst [vmem:[%s372 + $0x50] sm:$0xff] 0.0
        $region56: #{tpu_custom_call.1} parent=35 // pred_fallthru
          _
        %s406 = sadd.s32 %s390, 256
        %p407 = scmp.le.s32.totalorder %s406, 512
        // Predicated region
        $region57: #{tpu_custom_call.1} parent=35 // pred_check
          %p408 = pneg %p407
        $region58: #{tpu_custom_call.1} parent=35 // pred_check_branch
          %410 = sbr.rel (%p408) target = $region60
        $region59: #{tpu_custom_call.1} parent=35 // pred_region
          %v411 = vld [vmem:[%s333] sm:$0xff]
          %v412 = vld [vmem:[%s306] sm:$0xff]
          %v413 = vld [vmem:[%s315] sm:$0xff]
          %v414 = vld [vmem:[%s324] sm:$0xff]
          %v415 = vmul.f32 %v411, %v411
          %v416 = vmul.f32 %v412, %v411
          %v417 = vmul.f32 %v412, %v412
          %v418 = vmul.f32 %v413, %v411
          %v419 = vmul.f32 %v413, %v413
          %v420 = vmul.f32 %v414, %v411
          %v421 = vmul.f32 %v414, %v414
          %v422 = vadd.f32 %v411, 0.0
          %v423 = vadd.f32 %v415, 0.0
          %v424 = vadd.f32 %v412, 0.0
          %v425 = vadd.f32 %v416, 0.0
          %v426 = vadd.f32 %v417, 0.0
          %v427 = vadd.f32 %v413, 0.0
          %v428 = vadd.f32 %v418, 0.0
          %v429 = vadd.f32 %v419, 0.0
          %v430 = vadd.f32 %v414, 0.0
          %v431 = vadd.f32 %v420, 0.0
          %v432 = vadd.f32 %v421, 0.0
          %s433 = scalar_lea.vmem %s333, 8 [#allocation8]
          %v434 = vld [vmem:[%s433] sm:$0xff]
          %s435 = scalar_lea.vmem %s306, 8 [#allocation2]
          %v436 = vld [vmem:[%s435] sm:$0xff]
          %s437 = scalar_lea.vmem %s315, 8 [#allocation5]
          %v438 = vld [vmem:[%s437] sm:$0xff]
          %s439 = scalar_lea.vmem %s324, 8 [#allocation7]
          %v440 = vld [vmem:[%s439] sm:$0xff]
          %v441 = vmul.f32 %v434, %v434
          %v442 = vmul.f32 %v436, %v434
          %v443 = vmul.f32 %v436, %v436
          %v444 = vmul.f32 %v438, %v434
          %v445 = vmul.f32 %v438, %v438
          %v446 = vmul.f32 %v440, %v434
          %v447 = vmul.f32 %v440, %v440
          %v448 = vadd.f32 %v422, %v434
          %v449 = vadd.f32 %v423, %v441
          %v450 = vadd.f32 %v424, %v436
          %v451 = vadd.f32 %v425, %v442
          %v452 = vadd.f32 %v426, %v443
          %v453 = vadd.f32 %v427, %v438
          %v454 = vadd.f32 %v428, %v444
          %v455 = vadd.f32 %v429, %v445
          %v456 = vadd.f32 %v430, %v440
          %v457 = vadd.f32 %v431, %v446
          %v458 = vadd.f32 %v432, %v447
          %v459 = vld [vmem:[%s372] sm:$0xff]
          %v460 = vadd.f32 %v459, %v448
          %461 = vst [vmem:[%s372] sm:$0xff] %v460
          %v462 = vld [vmem:[%s372 + $0x8] sm:$0xff]
          %v463 = vadd.f32 %v462, %v449
          %464 = vst [vmem:[%s372 + $0x8] sm:$0xff] %v463
          %v465 = vld [vmem:[%s372 + $0x10] sm:$0xff]
          %v466 = vadd.f32 %v465, %v450
          %467 = vst [vmem:[%s372 + $0x10] sm:$0xff] %v466
          %v468 = vld [vmem:[%s372 + $0x18] sm:$0xff]
          %v469 = vadd.f32 %v468, %v451
          %470 = vst [vmem:[%s372 + $0x18] sm:$0xff] %v469
          %v471 = vld [vmem:[%s372 + $0x20] sm:$0xff]
          %v472 = vadd.f32 %v471, %v452
          %473 = vst [vmem:[%s372 + $0x20] sm:$0xff] %v472
          %v474 = vld [vmem:[%s372 + $0x28] sm:$0xff]
          %v475 = vadd.f32 %v474, %v453
          %476 = vst [vmem:[%s372 + $0x28] sm:$0xff] %v475
          %v477 = vld [vmem:[%s372 + $0x30] sm:$0xff]
          %v478 = vadd.f32 %v477, %v454
          %479 = vst [vmem:[%s372 + $0x30] sm:$0xff] %v478
          %v480 = vld [vmem:[%s372 + $0x38] sm:$0xff]
          %v481 = vadd.f32 %v480, %v455
          %482 = vst [vmem:[%s372 + $0x38] sm:$0xff] %v481
          %v483 = vld [vmem:[%s372 + $0x40] sm:$0xff]
          %v484 = vadd.f32 %v483, %v456
          %485 = vst [vmem:[%s372 + $0x40] sm:$0xff] %v484
          %v486 = vld [vmem:[%s372 + $0x48] sm:$0xff]
          %v487 = vadd.f32 %v486, %v457
          %488 = vst [vmem:[%s372 + $0x48] sm:$0xff] %v487
          %v489 = vld [vmem:[%s372 + $0x50] sm:$0xff]
          %v490 = vadd.f32 %v489, %v458
          %491 = vst [vmem:[%s372 + $0x50] sm:$0xff] %v490
        $region60: #{tpu_custom_call.1} parent=35 // pred_fallthru
          _
        %p492 = scmp.gt.s32.totalorder %s406, 512
        %p493 = scmp.lt.s32.totalorder %s390, 512
        %p494 = pnand %p492, %p493
        %p495 = pneg %p494
        // Predicated region
        $region61: #{tpu_custom_call.1} parent=35 // pred_check
          _
        $region62: #{tpu_custom_call.1} parent=35 // pred_check_branch
          %497 = sbr.rel (%p494) target = $region64
        $region63: #{tpu_custom_call.1} parent=35 // pred_region
          %v498 = vlaneseq
          %v499 = vand.u32 %v498, 127
          %v500 = vld [vmem:[%s333] sm:$0xff]
          %v501 = vld [vmem:[%s306] sm:$0xff]
          %v502 = vld [vmem:[%s315] sm:$0xff]
          %v503 = vld [vmem:[%s324] sm:$0xff]
          %v504 = vstv %s390
          %v505 = vadd.s32 %v499, %v504
          %vm506 = vcmp.lt.s32.totalorder %v505, 512
          %v507 = vsel %vm506, %v500, 0.0
          %v508 = vsel %vm506, %v501, 0.0
          %v509 = vsel %vm506, %v502, 0.0
          %v510 = vsel %vm506, %v503, 0.0
          %v511 = vmul.f32 %v507, %v507
          %v512 = vmul.f32 %v508, %v507
          %v513 = vmul.f32 %v508, %v508
          %v514 = vmul.f32 %v509, %v507
          %v515 = vmul.f32 %v509, %v509
          %v516 = vmul.f32 %v510, %v507
          %v517 = vmul.f32 %v510, %v510
          %v518 = vadd.f32 %v507, 0.0
          %v519 = vadd.f32 %v511, 0.0
          %v520 = vadd.f32 %v508, 0.0
          %v521 = vadd.f32 %v512, 0.0
          %v522 = vadd.f32 %v513, 0.0
          %v523 = vadd.f32 %v509, 0.0
          %v524 = vadd.f32 %v514, 0.0
          %v525 = vadd.f32 %v515, 0.0
          %v526 = vadd.f32 %v510, 0.0
          %v527 = vadd.f32 %v516, 0.0
          %v528 = vadd.f32 %v517, 0.0
          %s529 = scalar_lea.vmem %s333, 8 [#allocation8]
          %v530 = vld [vmem:[%s529] sm:$0xff]
          %s531 = scalar_lea.vmem %s306, 8 [#allocation2]
          %v532 = vld [vmem:[%s531] sm:$0xff]
          %s533 = scalar_lea.vmem %s315, 8 [#allocation5]
          %v534 = vld [vmem:[%s533] sm:$0xff]
          %s535 = scalar_lea.vmem %s324, 8 [#allocation7]
          %v536 = vld [vmem:[%s535] sm:$0xff]
          %s537 = sadd.s32 %s390, 128
          %v538 = vstv %s537
          %v539 = vadd.s32 %v499, %v538
          %vm540 = vcmp.lt.s32.totalorder %v539, 512
          %v541 = vsel %vm540, %v530, 0.0
          %v542 = vsel %vm540, %v532, 0.0
          %v543 = vsel %vm540, %v534, 0.0
          %v544 = vsel %vm540, %v536, 0.0
          %v545 = vmul.f32 %v541, %v541
          %v546 = vmul.f32 %v542, %v541
          %v547 = vmul.f32 %v542, %v542
          %v548 = vmul.f32 %v543, %v541
          %v549 = vmul.f32 %v543, %v543
          %v550 = vmul.f32 %v544, %v541
          %v551 = vmul.f32 %v544, %v544
          %v552 = vadd.f32 %v518, %v541
          %v553 = vadd.f32 %v519, %v545
          %v554 = vadd.f32 %v520, %v542
          %v555 = vadd.f32 %v521, %v546
          %v556 = vadd.f32 %v522, %v547
          %v557 = vadd.f32 %v523, %v543
          %v558 = vadd.f32 %v524, %v548
          %v559 = vadd.f32 %v525, %v549
          %v560 = vadd.f32 %v526, %v544
          %v561 = vadd.f32 %v527, %v550
          %v562 = vadd.f32 %v528, %v551
          %v563 = vld [vmem:[%s372] sm:$0xff]
          %v564 = vadd.f32 %v563, %v552
          %565 = vst [vmem:[%s372] sm:$0xff] %v564
          %v566 = vld [vmem:[%s372 + $0x8] sm:$0xff]
          %v567 = vadd.f32 %v566, %v553
          %568 = vst [vmem:[%s372 + $0x8] sm:$0xff] %v567
          %v569 = vld [vmem:[%s372 + $0x10] sm:$0xff]
          %v570 = vadd.f32 %v569, %v554
          %571 = vst [vmem:[%s372 + $0x10] sm:$0xff] %v570
          %v572 = vld [vmem:[%s372 + $0x18] sm:$0xff]
          %v573 = vadd.f32 %v572, %v555
          %574 = vst [vmem:[%s372 + $0x18] sm:$0xff] %v573
          %v575 = vld [vmem:[%s372 + $0x20] sm:$0xff]
          %v576 = vadd.f32 %v575, %v556
          %577 = vst [vmem:[%s372 + $0x20] sm:$0xff] %v576
          %v578 = vld [vmem:[%s372 + $0x28] sm:$0xff]
          %v579 = vadd.f32 %v578, %v557
          %580 = vst [vmem:[%s372 + $0x28] sm:$0xff] %v579
          %v581 = vld [vmem:[%s372 + $0x30] sm:$0xff]
          %v582 = vadd.f32 %v581, %v558
          %583 = vst [vmem:[%s372 + $0x30] sm:$0xff] %v582
          %v584 = vld [vmem:[%s372 + $0x38] sm:$0xff]
          %v585 = vadd.f32 %v584, %v559
          %586 = vst [vmem:[%s372 + $0x38] sm:$0xff] %v585
          %v587 = vld [vmem:[%s372 + $0x40] sm:$0xff]
          %v588 = vadd.f32 %v587, %v560
          %589 = vst [vmem:[%s372 + $0x40] sm:$0xff] %v588
          %v590 = vld [vmem:[%s372 + $0x48] sm:$0xff]
          %v591 = vadd.f32 %v590, %v561
          %592 = vst [vmem:[%s372 + $0x48] sm:$0xff] %v591
          %v593 = vld [vmem:[%s372 + $0x50] sm:$0xff]
          %v594 = vadd.f32 %v593, %v562
          %595 = vst [vmem:[%s372 + $0x50] sm:$0xff] %v594
        $region64: #{tpu_custom_call.1} parent=35 // pred_fallthru
          _
        %s596 = sand.u32 %s175, 1
        %s597 = scalar_lea.sflag [#allocation4], %s596
        %s598 = sand.u32 %s175, 1
        %s599 = smul.addr %s598, 88
        %s600 = scalar_lea.vmem [#allocation10], %s599
        // Predicated region
        $region65: #{tpu_custom_call.1} parent=35 // pred_check
          %p601 = pneg %p185
        $region66: #{tpu_custom_call.1} parent=35 // pred_check_branch
          %603 = sbr.rel (%p601) target = $region68
        $region67: #{tpu_custom_call.1} parent=35 // pred_region
          %s605 = ssub.s32 1408, 1408
          %606 = vsyncadd %s597, %s605
          %s607 = smul.addr %s31, 11
          %s608 = smul.addr %s607, 128
          %s609 = scalar_lea.hbm %s4, %s608
          %s611 = sshll.u32 %s600, 4
          %s612 = int_to_ptr.vmem [resolvable:$true] %s611
          %614 = dma.vmem_to_hbm [thread:$0]  %s612, 1408, %s609, %s597
        $region68: #{tpu_custom_call.1} parent=35 // pred_fallthru
          _
      $region36: #{tpu_custom_call.1} parent=5 // pred_fallthru
        _
      %p615 = scmp.le.s32.totalorder 2, %s22
      // Predicated region
      $region69: #{tpu_custom_call.1} parent=5 // pred_check
        %p616 = pneg %p615
      $region70: #{tpu_custom_call.1} parent=5 // pred_check_branch
        %618 = sbr.rel (%p616) target = $region72
      $region71: #{tpu_custom_call.1} parent=5 // pred_region
        %s619 = ssub.s32 %s22, 2
        // Predicated region
        $region73: #{tpu_custom_call.1} parent=71 // pred_check
          %p620 = pneg %p191
        $region74: #{tpu_custom_call.1} parent=71 // pred_check_branch
          %622 = sbr.rel (%p620) target = $region76
        $region75: #{tpu_custom_call.1} parent=71 // pred_region
          %s623 = sand.u32 %s176, 1
          %s624 = scalar_lea.sflag [#allocation4], %s623
          %s625 = sand.u32 %s176, 1
          %s626 = smul.addr %s625, 88
          %s627 = scalar_lea.vmem [#allocation10], %s626
          %628 = dma.done %s624, 1408
        $region76: #{tpu_custom_call.1} parent=71 // pred_fallthru
          _
      $region72: #{tpu_custom_call.1} parent=5 // pred_fallthru
        _
    $region6: #{tpu_custom_call.1} parent=1 // loop_footer
      %s26 = sadd.s32 1, %s22
    $region7: #{tpu_custom_call.1} parent=1 // loop_footer_branch
      %21 = sbr.rel target = $region3
    $region8: #{tpu_custom_call.1} parent=1 // loop_exit
      _
    %629 = vsyncpa [#allocation3], 1
    %s630 = scalar_lea.sflag [#allocation3], 1
    %631 = vsyncpa %s630, 1
    %632 = vsyncpa [#allocation6], 1
    %s633 = scalar_lea.sflag [#allocation6], 1
    %634 = vsyncpa %s633, 1
    %635 = vsyncpa [#allocation9], 1
    %s636 = scalar_lea.sflag [#allocation9], 1
    %637 = vsyncpa %s636, 1
    %638 = vsyncpa [#allocation4], 1
    %s639 = scalar_lea.sflag [#allocation4], 1
    %640 = vsyncpa %s639, 1

</llo_original>
